<compile_context>
chip_gen: v5e
topology: v5e:2x2
jax: 0.10.0
libtpu: 0.0.40
codegen_flags: <defaults>
</compile_context>

<pallas_src>
import functools

import jax
import jax.numpy as jnp
import numpy as np
from jax.experimental import pallas as pl
from jax.experimental.pallas import tpu as pltpu

# ---- LIFLayer hyper-parameters (defaults from LIFLayer.__init__) -----------
ALPHA = 0.9
BETA = 0.85
ALPHARP = 0.65
WRP = 1.0
TAU_M = 1.0 / (1.0 - ALPHA)   # 10.0
TAU_S = 1.0 / (1.0 - BETA)    # 6.666...
SPIKE_THRESH = 10.0           # SmoothStep.forward: (x >= 10)

MAX_TIME_CHUNK = 16           # timesteps fused per grid step (unrolled)


def _round_up(n, m):
    return ((n + m - 1) // m) * m


def _decolle_fused_kernel(x_ref, w_ref, b_ref, wro_ref, bro_ref,
                          s_out, u_out, ro_out,
                          p_sc, q_sc, r_sc, sprev_sc,
                          *, tchunk):
    """One grid step == `tchunk` LIFLayer.forward timesteps + readout linear.

    Neuron state (P, Q, R, S) lives in VMEM scratch across grid steps and in
    vregs across the statically-unrolled inner time loop.
    """
    c = pl.program_id(0)

    # LIFLayer.init_state: zeros (only before the first timestep of the batch).
    @pl.when(c == 0)
    def _init():
        p_sc[...] = jnp.zeros_like(p_sc)
        q_sc[...] = jnp.zeros_like(q_sc)
        r_sc[...] = jnp.zeros_like(r_sc)
        sprev_sc[...] = jnp.zeros_like(sprev_sc)

    # Load state / weights once per chunk; keep them in registers across the
    # unrolled inner loop (no per-timestep scratch round-trips).
    p = p_sc[...]
    q = q_sc[...]
    r = r_sc[...]
    s = sprev_sc[...]
    w = w_ref[...]
    bias = b_ref[...]
    wro = wro_ref[...]
    bro = bro_ref[...]

    for tt in range(tchunk):            # static unroll (tchunk is compile-time)
        sin = x_ref[tt]                 # (Bp, inFp)

        # Q = beta * Q + tau_s * Sin_t
        q_new = BETA * q + TAU_S * sin
        # P = alpha * P + tau_m * Q_old   (uses the *previous* Q, as in PyTorch)
        p = ALPHA * p + TAU_M * q
        q = q_new
        # R = alpharp * R - S_old * wrp
        r = ALPHARP * r - s * WRP

        # U = base_layer(P) + R   (weights pre-transposed to (K, N) on host)
        u = jnp.dot(p, w, preferred_element_type=jnp.float32) + bias + r

        # S = SmoothStep(U) = (U >= 10)
        s = (u >= SPIKE_THRESH).astype(jnp.float32)

        # Frozen readout nn.Linear applied to the spikes.
        ro = jnp.dot(s, wro, preferred_element_type=jnp.float32) + bro

        # Per-timestep outputs (static index -> lane-dense unmasked stores).
        s_out[tt] = s
        u_out[tt] = u
        ro_out[tt] = ro

    # Carry NeuronState to the next chunk.
    p_sc[...] = p
    q_sc[...] = q
    r_sc[...] = r
    sprev_sc[...] = s


@jax.jit
def decolle_forward_sequence(x_btf, W, b, Wro, bro):
    """Runs the DECOLLEBase.init-style time loop fully inside one kernel.

    x_btf: (B, T, inF) float32 spike train (data_batch[:, t, :] per step)
    W:     (outF, inF) base nn.Linear weight (PyTorch layout)
    b:     (1, outF)   base nn.Linear bias
    Wro:   (outC, outF) frozen readout weight
    bro:   (1, outC)    frozen readout bias
    Returns stacked (S, U, readout) over time: (T,B,outF), (T,B,outF), (T,B,outC).
    """
    B, T, inF = x_btf.shape
    outF = W.shape[0]
    outC = Wro.shape[0]
    f32 = jnp.float32

    # Pad to TPU-friendly shapes: sublane multiple of 8, lane multiple of 128.
    Bp = _round_up(B, 8)
    inFp = _round_up(inF, 128)
    outFp = _round_up(outF, 128)
    outCp = _round_up(outC, 128)

    # Time chunking: tchunk timesteps per grid step; pad T up to a multiple.
    tchunk = min(T, MAX_TIME_CHUNK)
    Tp = _round_up(T, tchunk)

    # Time-major, zero-padded input: (Tp, Bp, inFp).  (The pad already makes a
    # copy, so folding the transpose in here is free.  Trailing padded
    # timesteps are zero and their outputs are sliced away.)
    x_tbf = jnp.transpose(x_btf.astype(f32), (1, 0, 2))
    x_p = jnp.zeros((Tp, Bp, inFp), f32).at[:T, :B, :inF].set(x_tbf)

    # Pre-transposed, zero-padded weights so the matmul RHS is contiguous
    # (K-sublane, N-lane) and no in-kernel .T is needed.  Padded columns are
    # zero, so padded U / readout lanes stay 0 (< spike threshold).
    W_t = jnp.zeros((inFp, outFp), f32).at[:inF, :outF].set(W.T.astype(f32))
    b_p = jnp.zeros((1, outFp), f32).at[:, :outF].set(
        jnp.reshape(b, (1, outF)).astype(f32))
    Wro_t = jnp.zeros((outFp, outCp), f32).at[:outF, :outC].set(
        Wro.T.astype(f32))
    bro_p = jnp.zeros((1, outCp), f32).at[:, :outC].set(
        jnp.reshape(bro, (1, outC)).astype(f32))

    grid_spec = pltpu.PrefetchScalarGridSpec(
        num_scalar_prefetch=0,
        grid=(Tp // tchunk,),
        in_specs=[
            # Per-chunk input slab.
            pl.BlockSpec((tchunk, Bp, inFp), lambda c: (c, 0, 0)),
            # Weights / biases: constant block index -> DMA'd to VMEM once.
            pl.BlockSpec((inFp, outFp), lambda c: (0, 0)),
            pl.BlockSpec((1, outFp), lambda c: (0, 0)),
            pl.BlockSpec((outFp, outCp), lambda c: (0, 0)),
            pl.BlockSpec((1, outCp), lambda c: (0, 0)),
        ],
        out_specs=(
            pl.BlockSpec((tchunk, Bp, outFp), lambda c: (c, 0, 0)),  # S
            pl.BlockSpec((tchunk, Bp, outFp), lambda c: (c, 0, 0)),  # U
            pl.BlockSpec((tchunk, Bp, outCp), lambda c: (c, 0, 0)),  # readout
        ),
        scratch_shapes=[
            pltpu.VMEM((Bp, inFp), f32),    # P
            pltpu.VMEM((Bp, inFp), f32),    # Q
            pltpu.VMEM((Bp, outFp), f32),   # R
            pltpu.VMEM((Bp, outFp), f32),   # S (previous spikes)
        ],
    )

    out_shapes = (
        jax.ShapeDtypeStruct((Tp, Bp, outFp), f32),
        jax.ShapeDtypeStruct((Tp, Bp, outFp), f32),
        jax.ShapeDtypeStruct((Tp, Bp, outCp), f32),
    )

    kernel = functools.partial(_decolle_fused_kernel, tchunk=tchunk)

    S_p, U_p, ro_p = pl.pallas_call(
        kernel,
        out_shape=out_shapes,
        grid_spec=grid_spec,
        compiler_params=pltpu.CompilerParams(
            dimension_semantics=("arbitrary",)),   # time is a recurrence
    )(x_p, W_t, b_p, Wro_t, bro_p)

    return (S_p[:T, :B, :outF], U_p[:T, :B, :outF], ro_p[:T, :B, :outC])


if __name__ == "__main__":
    key = jax.random.PRNGKey(0)
    B, T, inF, outF, outC = 8, 10, 32, 64, 16
    lc_ampl = 0.5

    k_x, k_w, k_b, k_wro, k_bro = jax.random.split(key, 5)

    # Input spike train, (B, T, inF)  -- data_batch[:, t, :] per timestep.
    x = (jax.random.uniform(k_x, (B, T, inF)) < 0.3).astype(jnp.float32)

    # NOTE: LIFLayer.reset_parameters zeroes a Linear base layer's weights; we
    # use small random weights here so the spike / refractory path is actually
    # exercised by the demo.
    W = jax.random.uniform(k_w, (outF, inF), minval=-0.2, maxval=0.2,
                           dtype=jnp.float32)
    b = jax.random.uniform(k_b, (1, outF), minval=-0.001, maxval=0.001,
                           dtype=jnp.float32)

    # Readout (frozen) -- reset_lc_parameters: U(-stdv, stdv), stdv=lc_ampl/sqrt(inF_ro)
    stdv = lc_ampl / np.sqrt(np.float32(outF))
    Wro = jax.random.uniform(k_wro, (outC, outF), minval=-stdv, maxval=stdv,
                             dtype=jnp.float32)
    bro = jax.random.uniform(k_bro, (1, outC), minval=-stdv, maxval=stdv,
                             dtype=jnp.float32)

    S_seq, U_seq, ro_seq = decolle_forward_sequence(x, W, b, Wro, bro)
    jax.block_until_ready((S_seq, U_seq, ro_seq))

    assert S_seq.shape == (T, B, outF)
    assert U_seq.shape == (T, B, outF)
    assert ro_seq.shape == (T, B, outC)

    S_np = np.asarray(S_seq)
    U_np = np.asarray(U_seq)
    ro_np = np.asarray(ro_seq)
    assert np.all(np.isfinite(U_np)) and np.all(np.isfinite(ro_np))

    # --- lightweight correctness checks (threshold-robust) ------------------
    # t=0: P=0 so U_0 == bias exactly.
    np.testing.assert_allclose(
        U_np[0], np.broadcast_to(np.asarray(b), (B, outF)), atol=1e-5)
    # t=1: U_1 = tau_m*tau_s * x_0 @ W.T + b (no refractory yet, spike-free).
    U1_ref = (TAU_M * TAU_S) * jnp.einsum(
        "bi,oi->bo", x[:, 0, :], W,
        precision=jax.lax.Precision.HIGHEST) + b
    np.testing.assert_allclose(U_np[1], np.asarray(U1_ref),
                               rtol=1e-4, atol=5e-2)
    # Spike self-consistency: S == (U >= 10) everywhere.
    assert np.array_equal(S_np, (U_np >= SPIKE_THRESH).astype(np.float32))
    # Readout self-consistency: ro == S @ Wro.T + bro.
    ro_ref = np.einsum("tbo,co->tbc", S_np, np.asarray(Wro)) + np.asarray(bro)
    np.testing.assert_allclose(ro_np, ro_ref, rtol=1e-4, atol=1e-3)
    # The spike / refractory path actually fired.
    assert S_np.sum() > 0

    print("KERNEL_OK")
</pallas_src>

<mosaic_0001>
module attributes {stable_mosaic.version = 11 : i64} {
  func.func @_decolle_fused_kernel(%arg0: i32, %arg1: memref<10x8x128xf32, #tpu.memory_space<vmem>>, %arg2: memref<128x128xf32, #tpu.memory_space<vmem>>, %arg3: memref<1x128xf32, #tpu.memory_space<vmem>>, %arg4: memref<128x128xf32, #tpu.memory_space<vmem>>, %arg5: memref<1x128xf32, #tpu.memory_space<vmem>>, %arg6: memref<10x8x128xf32, #tpu.memory_space<vmem>>, %arg7: memref<10x8x128xf32, #tpu.memory_space<vmem>>, %arg8: memref<10x8x128xf32, #tpu.memory_space<vmem>>, %arg9: memref<8x128xf32, #tpu.memory_space<vmem>>, %arg10: memref<8x128xf32, #tpu.memory_space<vmem>>, %arg11: memref<8x128xf32, #tpu.memory_space<vmem>>, %arg12: memref<8x128xf32, #tpu.memory_space<vmem>>) attributes {dimension_semantics = [#tpu.dimension_semantics<arbitrary>], iteration_bounds = array<i64: 1>, scalar_prefetch = 0 : i64, scratch_operands = 4 : i64, tpu.core_type = #tpu.core_type<tc>, window_params = [{transform_indices = @transform_0, window_bounds = array<i64: 10, 8, 128>}, {pipeline_mode = #tpu.pipeline_mode<synchronous>, transform_indices = @transform_1, window_bounds = array<i64: 128, 128>}, {pipeline_mode = #tpu.pipeline_mode<synchronous>, transform_indices = @transform_2, window_bounds = array<i64: 1, 128>}, {pipeline_mode = #tpu.pipeline_mode<synchronous>, transform_indices = @transform_3, window_bounds = array<i64: 128, 128>}, {pipeline_mode = #tpu.pipeline_mode<synchronous>, transform_indices = @transform_4, window_bounds = array<i64: 1, 128>}, {transform_indices = @transform_5, window_bounds = array<i64: 10, 8, 128>}, {transform_indices = @transform_6, window_bounds = array<i64: 10, 8, 128>}, {transform_indices = @transform_7, window_bounds = array<i64: 10, 8, 128>}]} {
    %c0_i32 = arith.constant 0 : i32
    %0 = arith.cmpi eq, %arg0, %c0_i32 : i32
    %1 = arith.extui %0 : i1 to i32
    %c0_i32_0 = arith.constant 0 : i32
    %2 = arith.cmpi ne, %1, %c0_i32_0 : i32
    scf.if %2 {
      %cst_224 = arith.constant 0.000000e+00 : f32
      %385 = vector.broadcast %cst_224 : f32 to vector<8x128xf32>
      %c0_225 = arith.constant 0 : index
      %c0_226 = arith.constant 0 : index
      %386 = vector.load %arg9[%c0_225, %c0_226] : memref<8x128xf32, #tpu.memory_space<vmem>>, vector<8x128xf32>
      tpu.vector_store %arg9[%c0_225, %c0_226], %385 {strides = array<i32>} : memref<8x128xf32, #tpu.memory_space<vmem>>, vector<8x128xf32>,
      %cst_227 = arith.constant 0.000000e+00 : f32
      %387 = vector.broadcast %cst_227 : f32 to vector<8x128xf32>
      %c0_228 = arith.constant 0 : index
      %c0_229 = arith.constant 0 : index
      %388 = vector.load %arg10[%c0_228, %c0_229] : memref<8x128xf32, #tpu.memory_space<vmem>>, vector<8x128xf32>
      tpu.vector_store %arg10[%c0_228, %c0_229], %387 {strides = array<i32>} : memref<8x128xf32, #tpu.memory_space<vmem>>, vector<8x128xf32>,
      %cst_230 = arith.constant 0.000000e+00 : f32
      %389 = vector.broadcast %cst_230 : f32 to vector<8x128xf32>
      %c0_231 = arith.constant 0 : index
      %c0_232 = arith.constant 0 : index
      %390 = vector.load %arg11[%c0_231, %c0_232] : memref<8x128xf32, #tpu.memory_space<vmem>>, vector<8x128xf32>
      tpu.vector_store %arg11[%c0_231, %c0_232], %389 {strides = array<i32>} : memref<8x128xf32, #tpu.memory_space<vmem>>, vector<8x128xf32>,
      %cst_233 = arith.constant 0.000000e+00 : f32
      %391 = vector.broadcast %cst_233 : f32 to vector<8x128xf32>
      %c0_234 = arith.constant 0 : index
      %c0_235 = arith.constant 0 : index
      %392 = vector.load %arg12[%c0_234, %c0_235] : memref<8x128xf32, #tpu.memory_space<vmem>>, vector<8x128xf32>
      tpu.vector_store %arg12[%c0_234, %c0_235], %391 {strides = array<i32>} : memref<8x128xf32, #tpu.memory_space<vmem>>, vector<8x128xf32>,
    } else {
    }
    %c0 = arith.constant 0 : index
    %c0_1 = arith.constant 0 : index
    %3 = vector.load %arg9[%c0, %c0_1] : memref<8x128xf32, #tpu.memory_space<vmem>>, vector<8x128xf32>
    %c0_2 = arith.constant 0 : index
    %c0_3 = arith.constant 0 : index
    %4 = vector.load %arg10[%c0_2, %c0_3] : memref<8x128xf32, #tpu.memory_space<vmem>>, vector<8x128xf32>
    %c0_4 = arith.constant 0 : index
    %c0_5 = arith.constant 0 : index
    %5 = vector.load %arg11[%c0_4, %c0_5] : memref<8x128xf32, #tpu.memory_space<vmem>>, vector<8x128xf32>
    %c0_6 = arith.constant 0 : index
    %c0_7 = arith.constant 0 : index
    %6 = vector.load %arg12[%c0_6, %c0_7] : memref<8x128xf32, #tpu.memory_space<vmem>>, vector<8x128xf32>
    %c0_8 = arith.constant 0 : index
    %c0_9 = arith.constant 0 : index
    %7 = vector.load %arg2[%c0_8, %c0_9] : memref<128x128xf32, #tpu.memory_space<vmem>>, vector<128x128xf32>
    %c0_10 = arith.constant 0 : index
    %c0_11 = arith.constant 0 : index
    %8 = vector.load %arg3[%c0_10, %c0_11] : memref<1x128xf32, #tpu.memory_space<vmem>>, vector<1x128xf32>
    %c0_12 = arith.constant 0 : index
    %c0_13 = arith.constant 0 : index
    %9 = vector.load %arg4[%c0_12, %c0_13] : memref<128x128xf32, #tpu.memory_space<vmem>>, vector<128x128xf32>
    %c0_14 = arith.constant 0 : index
    %c0_15 = arith.constant 0 : index
    %10 = vector.load %arg5[%c0_14, %c0_15] : memref<1x128xf32, #tpu.memory_space<vmem>>, vector<1x128xf32>
    %c0_16 = arith.constant 0 : index
    %c0_17 = arith.constant 0 : index
    %c0_18 = arith.constant 0 : index
    %11 = vector.load %arg1[%c0_16, %c0_17, %c0_18] : memref<10x8x128xf32, #tpu.memory_space<vmem>>, vector<1x8x128xf32>
    %12 = vector.shape_cast %11 : vector<1x8x128xf32> to vector<8x128xf32>
    %cst = arith.constant 8.500000e-01 : f32
    %13 = vector.broadcast %cst : f32 to vector<8x128xf32>
    %14 = arith.mulf %13, %4 : vector<8x128xf32>
    %cst_19 = arith.constant 6.66666651 : f32
    %15 = vector.broadcast %cst_19 : f32 to vector<8x128xf32>
    %16 = arith.mulf %15, %12 : vector<8x128xf32>
    %17 = arith.addf %14, %16 : vector<8x128xf32>
    %cst_20 = arith.constant 0.899999976 : f32
    %18 = vector.broadcast %cst_20 : f32 to vector<8x128xf32>
    %19 = arith.mulf %18, %3 : vector<8x128xf32>
    %cst_21 = arith.constant 1.000000e+01 : f32
    %20 = vector.broadcast %cst_21 : f32 to vector<8x128xf32>
    %21 = arith.mulf %20, %4 : vector<8x128xf32>
    %22 = arith.addf %19, %21 : vector<8x128xf32>
    %cst_22 = arith.constant 6.500000e-01 : f32
    %23 = vector.broadcast %cst_22 : f32 to vector<8x128xf32>
    %24 = arith.mulf %23, %5 : vector<8x128xf32>
    %cst_23 = arith.constant 1.000000e+00 : f32
    %25 = vector.broadcast %cst_23 : f32 to vector<8x128xf32>
    %26 = arith.mulf %6, %25 : vector<8x128xf32>
    %27 = arith.subf %24, %26 : vector<8x128xf32>
    %cst_24 = arith.constant dense<0.000000e+00> : vector<8x128xf32>
    %28 = tpu.matmul %22, %7, %cst_24 {dimension_numbers = #tpu.dot_dimension_numbers<[1], [0], [0], [1], [0, 0, 1, 1], [], []>} : vector<8x128xf32>, vector<128x128xf32>, vector<8x128xf32> -> vector<8x128xf32>
    %29 = vector.broadcast %8 : vector<1x128xf32> to vector<8x128xf32>
    %30 = arith.addf %28, %29 : vector<8x128xf32>
    %31 = arith.addf %30, %27 : vector<8x128xf32>
    %cst_25 = arith.constant 1.000000e+01 : f32
    %32 = vector.broadcast %cst_25 : f32 to vector<8x128xf32>
    %33 = arith.cmpf oge, %31, %32 : vector<8x128xf32>
    %34 = arith.extui %33 : vector<8x128xi1> to vector<8x128xi32>
    %35 = arith.sitofp %34 : vector<8x128xi32> to vector<8x128xf32>
    %cst_26 = arith.constant dense<0.000000e+00> : vector<8x128xf32>
    %36 = tpu.matmul %35, %9, %cst_26 {dimension_numbers = #tpu.dot_dimension_numbers<[1], [0], [0], [1], [0, 0, 1, 1], [], []>} : vector<8x128xf32>, vector<128x128xf32>, vector<8x128xf32> -> vector<8x128xf32>
    %37 = vector.broadcast %10 : vector<1x128xf32> to vector<8x128xf32>
    %38 = arith.addf %36, %37 : vector<8x128xf32>
    %c0_27 = arith.constant 0 : index
    %c0_28 = arith.constant 0 : index
    %c0_29 = arith.constant 0 : index
    %39 = vector.load %arg6[%c0_27, %c0_28, %c0_29] : memref<10x8x128xf32, #tpu.memory_space<vmem>>, vector<1x8x128xf32>
    %40 = vector.shape_cast %39 : vector<1x8x128xf32> to vector<8x128xf32>
    %41 = vector.shape_cast %35 : vector<8x128xf32> to vector<1x8x128xf32>
    tpu.vector_store %arg6[%c0_27, %c0_28, %c0_29], %41 {strides = array<i32>} : memref<10x8x128xf32, #tpu.memory_space<vmem>>, vector<1x8x128xf32>,
    %c0_30 = arith.constant 0 : index
    %c0_31 = arith.constant 0 : index
    %c0_32 = arith.constant 0 : index
    %42 = vector.load %arg7[%c0_30, %c0_31, %c0_32] : memref<10x8x128xf32, #tpu.memory_space<vmem>>, vector<1x8x128xf32>
    %43 = vector.shape_cast %42 : vector<1x8x128xf32> to vector<8x128xf32>
    %44 = vector.shape_cast %31 : vector<8x128xf32> to vector<1x8x128xf32>
    tpu.vector_store %arg7[%c0_30, %c0_31, %c0_32], %44 {strides = array<i32>} : memref<10x8x128xf32, #tpu.memory_space<vmem>>, vector<1x8x128xf32>,
    %c0_33 = arith.constant 0 : index
    %c0_34 = arith.constant 0 : index
    %c0_35 = arith.constant 0 : index
    %45 = vector.load %arg8[%c0_33, %c0_34, %c0_35] : memref<10x8x128xf32, #tpu.memory_space<vmem>>, vector<1x8x128xf32>
    %46 = vector.shape_cast %45 : vector<1x8x128xf32> to vector<8x128xf32>
    %47 = vector.shape_cast %38 : vector<8x128xf32> to vector<1x8x128xf32>
    tpu.vector_store %arg8[%c0_33, %c0_34, %c0_35], %47 {strides = array<i32>} : memref<10x8x128xf32, #tpu.memory_space<vmem>>, vector<1x8x128xf32>,
    %c1 = arith.constant 1 : index
    %c0_36 = arith.constant 0 : index
    %c0_37 = arith.constant 0 : index
    %48 = vector.load %arg1[%c1, %c0_36, %c0_37] : memref<10x8x128xf32, #tpu.memory_space<vmem>>, vector<1x8x128xf32>
    %49 = vector.shape_cast %48 : vector<1x8x128xf32> to vector<8x128xf32>
    %cst_38 = arith.constant 8.500000e-01 : f32
    %50 = vector.broadcast %cst_38 : f32 to vector<8x128xf32>
    %51 = arith.mulf %50, %17 : vector<8x128xf32>
    %cst_39 = arith.constant 6.66666651 : f32
    %52 = vector.broadcast %cst_39 : f32 to vector<8x128xf32>
    %53 = arith.mulf %52, %49 : vector<8x128xf32>
    %54 = arith.addf %51, %53 : vector<8x128xf32>
    %cst_40 = arith.constant 0.899999976 : f32
    %55 = vector.broadcast %cst_40 : f32 to vector<8x128xf32>
    %56 = arith.mulf %55, %22 : vector<8x128xf32>
    %cst_41 = arith.constant 1.000000e+01 : f32
    %57 = vector.broadcast %cst_41 : f32 to vector<8x128xf32>
    %58 = arith.mulf %57, %17 : vector<8x128xf32>
    %59 = arith.addf %56, %58 : vector<8x128xf32>
    %cst_42 = arith.constant 6.500000e-01 : f32
    %60 = vector.broadcast %cst_42 : f32 to vector<8x128xf32>
    %61 = arith.mulf %60, %27 : vector<8x128xf32>
    %cst_43 = arith.constant 1.000000e+00 : f32
    %62 = vector.broadcast %cst_43 : f32 to vector<8x128xf32>
    %63 = arith.mulf %35, %62 : vector<8x128xf32>
    %64 = arith.subf %61, %63 : vector<8x128xf32>
    %cst_44 = arith.constant dense<0.000000e+00> : vector<8x128xf32>
    %65 = tpu.matmul %59, %7, %cst_44 {dimension_numbers = #tpu.dot_dimension_numbers<[1], [0], [0], [1], [0, 0, 1, 1], [], []>} : vector<8x128xf32>, vector<128x128xf32>, vector<8x128xf32> -> vector<8x128xf32>
    %66 = vector.broadcast %8 : vector<1x128xf32> to vector<8x128xf32>
    %67 = arith.addf %65, %66 : vector<8x128xf32>
    %68 = arith.addf %67, %64 : vector<8x128xf32>
    %cst_45 = arith.constant 1.000000e+01 : f32
    %69 = vector.broadcast %cst_45 : f32 to vector<8x128xf32>
    %70 = arith.cmpf oge, %68, %69 : vector<8x128xf32>
    %71 = arith.extui %70 : vector<8x128xi1> to vector<8x128xi32>
    %72 = arith.sitofp %71 : vector<8x128xi32> to vector<8x128xf32>
    %cst_46 = arith.constant dense<0.000000e+00> : vector<8x128xf32>
    %73 = tpu.matmul %72, %9, %cst_46 {dimension_numbers = #tpu.dot_dimension_numbers<[1], [0], [0], [1], [0, 0, 1, 1], [], []>} : vector<8x128xf32>, vector<128x128xf32>, vector<8x128xf32> -> vector<8x128xf32>
    %74 = vector.broadcast %10 : vector<1x128xf32> to vector<8x128xf32>
    %75 = arith.addf %73, %74 : vector<8x128xf32>
    %c1_47 = arith.constant 1 : index
    %c0_48 = arith.constant 0 : index
    %c0_49 = arith.constant 0 : index
    %76 = vector.load %arg6[%c1_47, %c0_48, %c0_49] : memref<10x8x128xf32, #tpu.memory_space<vmem>>, vector<1x8x128xf32>
    %77 = vector.shape_cast %76 : vector<1x8x128xf32> to vector<8x128xf32>
    %78 = vector.shape_cast %72 : vector<8x128xf32> to vector<1x8x128xf32>
    tpu.vector_store %arg6[%c1_47, %c0_48, %c0_49], %78 {strides = array<i32>} : memref<10x8x128xf32, #tpu.memory_space<vmem>>, vector<1x8x128xf32>,
    %c1_50 = arith.constant 1 : index
    %c0_51 = arith.constant 0 : index
    %c0_52 = arith.constant 0 : index
    %79 = vector.load %arg7[%c1_50, %c0_51, %c0_52] : memref<10x8x128xf32, #tpu.memory_space<vmem>>, vector<1x8x128xf32>
    %80 = vector.shape_cast %79 : vector<1x8x128xf32> to vector<8x128xf32>
    %81 = vector.shape_cast %68 : vector<8x128xf32> to vector<1x8x128xf32>
    tpu.vector_store %arg7[%c1_50, %c0_51, %c0_52], %81 {strides = array<i32>} : memref<10x8x128xf32, #tpu.memory_space<vmem>>, vector<1x8x128xf32>,
    %c1_53 = arith.constant 1 : index
    %c0_54 = arith.constant 0 : index
    %c0_55 = arith.constant 0 : index
    %82 = vector.load %arg8[%c1_53, %c0_54, %c0_55] : memref<10x8x128xf32, #tpu.memory_space<vmem>>, vector<1x8x128xf32>
    %83 = vector.shape_cast %82 : vector<1x8x128xf32> to vector<8x128xf32>
    %84 = vector.shape_cast %75 : vector<8x128xf32> to vector<1x8x128xf32>
    tpu.vector_store %arg8[%c1_53, %c0_54, %c0_55], %84 {strides = array<i32>} : memref<10x8x128xf32, #tpu.memory_space<vmem>>, vector<1x8x128xf32>,
    %c2 = arith.constant 2 : index
    %c0_56 = arith.constant 0 : index
    %c0_57 = arith.constant 0 : index
    %85 = vector.load %arg1[%c2, %c0_56, %c0_57] : memref<10x8x128xf32, #tpu.memory_space<vmem>>, vector<1x8x128xf32>
    %86 = vector.shape_cast %85 : vector<1x8x128xf32> to vector<8x128xf32>
    %cst_58 = arith.constant 8.500000e-01 : f32
    %87 = vector.broadcast %cst_58 : f32 to vector<8x128xf32>
    %88 = arith.mulf %87, %54 : vector<8x128xf32>
    %cst_59 = arith.constant 6.66666651 : f32
    %89 = vector.broadcast %cst_59 : f32 to vector<8x128xf32>
    %90 = arith.mulf %89, %86 : vector<8x128xf32>
    %91 = arith.addf %88, %90 : vector<8x128xf32>
    %cst_60 = arith.constant 0.899999976 : f32
    %92 = vector.broadcast %cst_60 : f32 to vector<8x128xf32>
    %93 = arith.mulf %92, %59 : vector<8x128xf32>
    %cst_61 = arith.constant 1.000000e+01 : f32
    %94 = vector.broadcast %cst_61 : f32 to vector<8x128xf32>
    %95 = arith.mulf %94, %54 : vector<8x128xf32>
    %96 = arith.addf %93, %95 : vector<8x128xf32>
    %cst_62 = arith.constant 6.500000e-01 : f32
    %97 = vector.broadcast %cst_62 : f32 to vector<8x128xf32>
    %98 = arith.mulf %97, %64 : vector<8x128xf32>
    %cst_63 = arith.constant 1.000000e+00 : f32
    %99 = vector.broadcast %cst_63 : f32 to vector<8x128xf32>
    %100 = arith.mulf %72, %99 : vector<8x128xf32>
    %101 = arith.subf %98, %100 : vector<8x128xf32>
    %cst_64 = arith.constant dense<0.000000e+00> : vector<8x128xf32>
    %102 = tpu.matmul %96, %7, %cst_64 {dimension_numbers = #tpu.dot_dimension_numbers<[1], [0], [0], [1], [0, 0, 1, 1], [], []>} : vector<8x128xf32>, vector<128x128xf32>, vector<8x128xf32> -> vector<8x128xf32>
    %103 = vector.broadcast %8 : vector<1x128xf32> to vector<8x128xf32>
    %104 = arith.addf %102, %103 : vector<8x128xf32>
    %105 = arith.addf %104, %101 : vector<8x128xf32>
    %cst_65 = arith.constant 1.000000e+01 : f32
    %106 = vector.broadcast %cst_65 : f32 to vector<8x128xf32>
    %107 = arith.cmpf oge, %105, %106 : vector<8x128xf32>
    %108 = arith.extui %107 : vector<8x128xi1> to vector<8x128xi32>
    %109 = arith.sitofp %108 : vector<8x128xi32> to vector<8x128xf32>
    %cst_66 = arith.constant dense<0.000000e+00> : vector<8x128xf32>
    %110 = tpu.matmul %109, %9, %cst_66 {dimension_numbers = #tpu.dot_dimension_numbers<[1], [0], [0], [1], [0, 0, 1, 1], [], []>} : vector<8x128xf32>, vector<128x128xf32>, vector<8x128xf32> -> vector<8x128xf32>
    %111 = vector.broadcast %10 : vector<1x128xf32> to vector<8x128xf32>
    %112 = arith.addf %110, %111 : vector<8x128xf32>
    %c2_67 = arith.constant 2 : index
    %c0_68 = arith.constant 0 : index
    %c0_69 = arith.constant 0 : index
    %113 = vector.load %arg6[%c2_67, %c0_68, %c0_69] : memref<10x8x128xf32, #tpu.memory_space<vmem>>, vector<1x8x128xf32>
    %114 = vector.shape_cast %113 : vector<1x8x128xf32> to vector<8x128xf32>
    %115 = vector.shape_cast %109 : vector<8x128xf32> to vector<1x8x128xf32>
    tpu.vector_store %arg6[%c2_67, %c0_68, %c0_69], %115 {strides = array<i32>} : memref<10x8x128xf32, #tpu.memory_space<vmem>>, vector<1x8x128xf32>,
    %c2_70 = arith.constant 2 : index
    %c0_71 = arith.constant 0 : index
    %c0_72 = arith.constant 0 : index
    %116 = vector.load %arg7[%c2_70, %c0_71, %c0_72] : memref<10x8x128xf32, #tpu.memory_space<vmem>>, vector<1x8x128xf32>
    %117 = vector.shape_cast %116 : vector<1x8x128xf32> to vector<8x128xf32>
    %118 = vector.shape_cast %105 : vector<8x128xf32> to vector<1x8x128xf32>
    tpu.vector_store %arg7[%c2_70, %c0_71, %c0_72], %118 {strides = array<i32>} : memref<10x8x128xf32, #tpu.memory_space<vmem>>, vector<1x8x128xf32>,
    %c2_73 = arith.constant 2 : index
    %c0_74 = arith.constant 0 : index
    %c0_75 = arith.constant 0 : index
    %119 = vector.load %arg8[%c2_73, %c0_74, %c0_75] : memref<10x8x128xf32, #tpu.memory_space<vmem>>, vector<1x8x128xf32>
    %120 = vector.shape_cast %119 : vector<1x8x128xf32> to vector<8x128xf32>
    %121 = vector.shape_cast %112 : vector<8x128xf32> to vector<1x8x128xf32>
    tpu.vector_store %arg8[%c2_73, %c0_74, %c0_75], %121 {strides = array<i32>} : memref<10x8x128xf32, #tpu.memory_space<vmem>>, vector<1x8x128xf32>,
    %c3 = arith.constant 3 : index
    %c0_76 = arith.constant 0 : index
    %c0_77 = arith.constant 0 : index
    %122 = vector.load %arg1[%c3, %c0_76, %c0_77] : memref<10x8x128xf32, #tpu.memory_space<vmem>>, vector<1x8x128xf32>
    %123 = vector.shape_cast %122 : vector<1x8x128xf32> to vector<8x128xf32>
    %cst_78 = arith.constant 8.500000e-01 : f32
    %124 = vector.broadcast %cst_78 : f32 to vector<8x128xf32>
    %125 = arith.mulf %124, %91 : vector<8x128xf32>
    %cst_79 = arith.constant 6.66666651 : f32
    %126 = vector.broadcast %cst_79 : f32 to vector<8x128xf32>
    %127 = arith.mulf %126, %123 : vector<8x128xf32>
    %128 = arith.addf %125, %127 : vector<8x128xf32>
    %cst_80 = arith.constant 0.899999976 : f32
    %129 = vector.broadcast %cst_80 : f32 to vector<8x128xf32>
    %130 = arith.mulf %129, %96 : vector<8x128xf32>
    %cst_81 = arith.constant 1.000000e+01 : f32
    %131 = vector.broadcast %cst_81 : f32 to vector<8x128xf32>
    %132 = arith.mulf %131, %91 : vector<8x128xf32>
    %133 = arith.addf %130, %132 : vector<8x128xf32>
    %cst_82 = arith.constant 6.500000e-01 : f32
    %134 = vector.broadcast %cst_82 : f32 to vector<8x128xf32>
    %135 = arith.mulf %134, %101 : vector<8x128xf32>
    %cst_83 = arith.constant 1.000000e+00 : f32
    %136 = vector.broadcast %cst_83 : f32 to vector<8x128xf32>
    %137 = arith.mulf %109, %136 : vector<8x128xf32>
    %138 = arith.subf %135, %137 : vector<8x128xf32>
    %cst_84 = arith.constant dense<0.000000e+00> : vector<8x128xf32>
    %139 = tpu.matmul %133, %7, %cst_84 {dimension_numbers = #tpu.dot_dimension_numbers<[1], [0], [0], [1], [0, 0, 1, 1], [], []>} : vector<8x128xf32>, vector<128x128xf32>, vector<8x128xf32> -> vector<8x128xf32>
    %140 = vector.broadcast %8 : vector<1x128xf32> to vector<8x128xf32>
    %141 = arith.addf %139, %140 : vector<8x128xf32>
    %142 = arith.addf %141, %138 : vector<8x128xf32>
    %cst_85 = arith.constant 1.000000e+01 : f32
    %143 = vector.broadcast %cst_85 : f32 to vector<8x128xf32>
    %144 = arith.cmpf oge, %142, %143 : vector<8x128xf32>
    %145 = arith.extui %144 : vector<8x128xi1> to vector<8x128xi32>
    %146 = arith.sitofp %145 : vector<8x128xi32> to vector<8x128xf32>
    %cst_86 = arith.constant dense<0.000000e+00> : vector<8x128xf32>
    %147 = tpu.matmul %146, %9, %cst_86 {dimension_numbers = #tpu.dot_dimension_numbers<[1], [0], [0], [1], [0, 0, 1, 1], [], []>} : vector<8x128xf32>, vector<128x128xf32>, vector<8x128xf32> -> vector<8x128xf32>
    %148 = vector.broadcast %10 : vector<1x128xf32> to vector<8x128xf32>
    %149 = arith.addf %147, %148 : vector<8x128xf32>
    %c3_87 = arith.constant 3 : index
    %c0_88 = arith.constant 0 : index
    %c0_89 = arith.constant 0 : index
    %150 = vector.load %arg6[%c3_87, %c0_88, %c0_89] : memref<10x8x128xf32, #tpu.memory_space<vmem>>, vector<1x8x128xf32>
    %151 = vector.shape_cast %150 : vector<1x8x128xf32> to vector<8x128xf32>
    %152 = vector.shape_cast %146 : vector<8x128xf32> to vector<1x8x128xf32>
    tpu.vector_store %arg6[%c3_87, %c0_88, %c0_89], %152 {strides = array<i32>} : memref<10x8x128xf32, #tpu.memory_space<vmem>>, vector<1x8x128xf32>,
    %c3_90 = arith.constant 3 : index
    %c0_91 = arith.constant 0 : index
    %c0_92 = arith.constant 0 : index
    %153 = vector.load %arg7[%c3_90, %c0_91, %c0_92] : memref<10x8x128xf32, #tpu.memory_space<vmem>>, vector<1x8x128xf32>
    %154 = vector.shape_cast %153 : vector<1x8x128xf32> to vector<8x128xf32>
    %155 = vector.shape_cast %142 : vector<8x128xf32> to vector<1x8x128xf32>
    tpu.vector_store %arg7[%c3_90, %c0_91, %c0_92], %155 {strides = array<i32>} : memref<10x8x128xf32, #tpu.memory_space<vmem>>, vector<1x8x128xf32>,
    %c3_93 = arith.constant 3 : index
    %c0_94 = arith.constant 0 : index
    %c0_95 = arith.constant 0 : index
    %156 = vector.load %arg8[%c3_93, %c0_94, %c0_95] : memref<10x8x128xf32, #tpu.memory_space<vmem>>, vector<1x8x128xf32>
    %157 = vector.shape_cast %156 : vector<1x8x128xf32> to vector<8x128xf32>
    %158 = vector.shape_cast %149 : vector<8x128xf32> to vector<1x8x128xf32>
    tpu.vector_store %arg8[%c3_93, %c0_94, %c0_95], %158 {strides = array<i32>} : memref<10x8x128xf32, #tpu.memory_space<vmem>>, vector<1x8x128xf32>,
    %c4 = arith.constant 4 : index
    %c0_96 = arith.constant 0 : index
    %c0_97 = arith.constant 0 : index
    %159 = vector.load %arg1[%c4, %c0_96, %c0_97] : memref<10x8x128xf32, #tpu.memory_space<vmem>>, vector<1x8x128xf32>
    %160 = vector.shape_cast %159 : vector<1x8x128xf32> to vector<8x128xf32>
    %cst_98 = arith.constant 8.500000e-01 : f32
    %161 = vector.broadcast %cst_98 : f32 to vector<8x128xf32>
    %162 = arith.mulf %161, %128 : vector<8x128xf32>
    %cst_99 = arith.constant 6.66666651 : f32
    %163 = vector.broadcast %cst_99 : f32 to vector<8x128xf32>
    %164 = arith.mulf %163, %160 : vector<8x128xf32>
    %165 = arith.addf %162, %164 : vector<8x128xf32>
    %cst_100 = arith.constant 0.899999976 : f32
    %166 = vector.broadcast %cst_100 : f32 to vector<8x128xf32>
    %167 = arith.mulf %166, %133 : vector<8x128xf32>
    %cst_101 = arith.constant 1.000000e+01 : f32
    %168 = vector.broadcast %cst_101 : f32 to vector<8x128xf32>
    %169 = arith.mulf %168, %128 : vector<8x128xf32>
    %170 = arith.addf %167, %169 : vector<8x128xf32>
    %cst_102 = arith.constant 6.500000e-01 : f32
    %171 = vector.broadcast %cst_102 : f32 to vector<8x128xf32>
    %172 = arith.mulf %171, %138 : vector<8x128xf32>
    %cst_103 = arith.constant 1.000000e+00 : f32
    %173 = vector.broadcast %cst_103 : f32 to vector<8x128xf32>
    %174 = arith.mulf %146, %173 : vector<8x128xf32>
    %175 = arith.subf %172, %174 : vector<8x128xf32>
    %cst_104 = arith.constant dense<0.000000e+00> : vector<8x128xf32>
    %176 = tpu.matmul %170, %7, %cst_104 {dimension_numbers = #tpu.dot_dimension_numbers<[1], [0], [0], [1], [0, 0, 1, 1], [], []>} : vector<8x128xf32>, vector<128x128xf32>, vector<8x128xf32> -> vector<8x128xf32>
    %177 = vector.broadcast %8 : vector<1x128xf32> to vector<8x128xf32>
    %178 = arith.addf %176, %177 : vector<8x128xf32>
    %179 = arith.addf %178, %175 : vector<8x128xf32>
    %cst_105 = arith.constant 1.000000e+01 : f32
    %180 = vector.broadcast %cst_105 : f32 to vector<8x128xf32>
    %181 = arith.cmpf oge, %179, %180 : vector<8x128xf32>
    %182 = arith.extui %181 : vector<8x128xi1> to vector<8x128xi32>
    %183 = arith.sitofp %182 : vector<8x128xi32> to vector<8x128xf32>
    %cst_106 = arith.constant dense<0.000000e+00> : vector<8x128xf32>
    %184 = tpu.matmul %183, %9, %cst_106 {dimension_numbers = #tpu.dot_dimension_numbers<[1], [0], [0], [1], [0, 0, 1, 1], [], []>} : vector<8x128xf32>, vector<128x128xf32>, vector<8x128xf32> -> vector<8x128xf32>
    %185 = vector.broadcast %10 : vector<1x128xf32> to vector<8x128xf32>
    %186 = arith.addf %184, %185 : vector<8x128xf32>
    %c4_107 = arith.constant 4 : index
    %c0_108 = arith.constant 0 : index
    %c0_109 = arith.constant 0 : index
    %187 = vector.load %arg6[%c4_107, %c0_108, %c0_109] : memref<10x8x128xf32, #tpu.memory_space<vmem>>, vector<1x8x128xf32>
    %188 = vector.shape_cast %187 : vector<1x8x128xf32> to vector<8x128xf32>
    %189 = vector.shape_cast %183 : vector<8x128xf32> to vector<1x8x128xf32>
    tpu.vector_store %arg6[%c4_107, %c0_108, %c0_109], %189 {strides = array<i32>} : memref<10x8x128xf32, #tpu.memory_space<vmem>>, vector<1x8x128xf32>,
    %c4_110 = arith.constant 4 : index
    %c0_111 = arith.constant 0 : index
    %c0_112 = arith.constant 0 : index
    %190 = vector.load %arg7[%c4_110, %c0_111, %c0_112] : memref<10x8x128xf32, #tpu.memory_space<vmem>>, vector<1x8x128xf32>
    %191 = vector.shape_cast %190 : vector<1x8x128xf32> to vector<8x128xf32>
    %192 = vector.shape_cast %179 : vector<8x128xf32> to vector<1x8x128xf32>
    tpu.vector_store %arg7[%c4_110, %c0_111, %c0_112], %192 {strides = array<i32>} : memref<10x8x128xf32, #tpu.memory_space<vmem>>, vector<1x8x128xf32>,
    %c4_113 = arith.constant 4 : index
    %c0_114 = arith.constant 0 : index
    %c0_115 = arith.constant 0 : index
    %193 = vector.load %arg8[%c4_113, %c0_114, %c0_115] : memref<10x8x128xf32, #tpu.memory_space<vmem>>, vector<1x8x128xf32>
    %194 = vector.shape_cast %193 : vector<1x8x128xf32> to vector<8x128xf32>
    %195 = vector.shape_cast %186 : vector<8x128xf32> to vector<1x8x128xf32>
    tpu.vector_store %arg8[%c4_113, %c0_114, %c0_115], %195 {strides = array<i32>} : memref<10x8x128xf32, #tpu.memory_space<vmem>>, vector<1x8x128xf32>,
    %c5 = arith.constant 5 : index
    %c0_116 = arith.constant 0 : index
    %c0_117 = arith.constant 0 : index
    %196 = vector.load %arg1[%c5, %c0_116, %c0_117] : memref<10x8x128xf32, #tpu.memory_space<vmem>>, vector<1x8x128xf32>
    %197 = vector.shape_cast %196 : vector<1x8x128xf32> to vector<8x128xf32>
    %cst_118 = arith.constant 8.500000e-01 : f32
    %198 = vector.broadcast %cst_118 : f32 to vector<8x128xf32>
    %199 = arith.mulf %198, %165 : vector<8x128xf32>
    %cst_119 = arith.constant 6.66666651 : f32
    %200 = vector.broadcast %cst_119 : f32 to vector<8x128xf32>
    %201 = arith.mulf %200, %197 : vector<8x128xf32>
    %202 = arith.addf %199, %201 : vector<8x128xf32>
    %cst_120 = arith.constant 0.899999976 : f32
    %203 = vector.broadcast %cst_120 : f32 to vector<8x128xf32>
    %204 = arith.mulf %203, %170 : vector<8x128xf32>
    %cst_121 = arith.constant 1.000000e+01 : f32
    %205 = vector.broadcast %cst_121 : f32 to vector<8x128xf32>
    %206 = arith.mulf %205, %165 : vector<8x128xf32>
    %207 = arith.addf %204, %206 : vector<8x128xf32>
    %cst_122 = arith.constant 6.500000e-01 : f32
    %208 = vector.broadcast %cst_122 : f32 to vector<8x128xf32>
    %209 = arith.mulf %208, %175 : vector<8x128xf32>
    %cst_123 = arith.constant 1.000000e+00 : f32
    %210 = vector.broadcast %cst_123 : f32 to vector<8x128xf32>
    %211 = arith.mulf %183, %210 : vector<8x128xf32>
    %212 = arith.subf %209, %211 : vector<8x128xf32>
    %cst_124 = arith.constant dense<0.000000e+00> : vector<8x128xf32>
    %213 = tpu.matmul %207, %7, %cst_124 {dimension_numbers = #tpu.dot_dimension_numbers<[1], [0], [0], [1], [0, 0, 1, 1], [], []>} : vector<8x128xf32>, vector<128x128xf32>, vector<8x128xf32> -> vector<8x128xf32>
    %214 = vector.broadcast %8 : vector<1x128xf32> to vector<8x128xf32>
    %215 = arith.addf %213, %214 : vector<8x128xf32>
    %216 = arith.addf %215, %212 : vector<8x128xf32>
    %cst_125 = arith.constant 1.000000e+01 : f32
    %217 = vector.broadcast %cst_125 : f32 to vector<8x128xf32>
    %218 = arith.cmpf oge, %216, %217 : vector<8x128xf32>
    %219 = arith.extui %218 : vector<8x128xi1> to vector<8x128xi32>
    %220 = arith.sitofp %219 : vector<8x128xi32> to vector<8x128xf32>
    %cst_126 = arith.constant dense<0.000000e+00> : vector<8x128xf32>
    %221 = tpu.matmul %220, %9, %cst_126 {dimension_numbers = #tpu.dot_dimension_numbers<[1], [0], [0], [1], [0, 0, 1, 1], [], []>} : vector<8x128xf32>, vector<128x128xf32>, vector<8x128xf32> -> vector<8x128xf32>
    %222 = vector.broadcast %10 : vector<1x128xf32> to vector<8x128xf32>
    %223 = arith.addf %221, %222 : vector<8x128xf32>
    %c5_127 = arith.constant 5 : index
    %c0_128 = arith.constant 0 : index
    %c0_129 = arith.constant 0 : index
    %224 = vector.load %arg6[%c5_127, %c0_128, %c0_129] : memref<10x8x128xf32, #tpu.memory_space<vmem>>, vector<1x8x128xf32>
    %225 = vector.shape_cast %224 : vector<1x8x128xf32> to vector<8x128xf32>
    %226 = vector.shape_cast %220 : vector<8x128xf32> to vector<1x8x128xf32>
    tpu.vector_store %arg6[%c5_127, %c0_128, %c0_129], %226 {strides = array<i32>} : memref<10x8x128xf32, #tpu.memory_space<vmem>>, vector<1x8x128xf32>,
    %c5_130 = arith.constant 5 : index
    %c0_131 = arith.constant 0 : index
    %c0_132 = arith.constant 0 : index
    %227 = vector.load %arg7[%c5_130, %c0_131, %c0_132] : memref<10x8x128xf32, #tpu.memory_space<vmem>>, vector<1x8x128xf32>
    %228 = vector.shape_cast %227 : vector<1x8x128xf32> to vector<8x128xf32>
    %229 = vector.shape_cast %216 : vector<8x128xf32> to vector<1x8x128xf32>
    tpu.vector_store %arg7[%c5_130, %c0_131, %c0_132], %229 {strides = array<i32>} : memref<10x8x128xf32, #tpu.memory_space<vmem>>, vector<1x8x128xf32>,
    %c5_133 = arith.constant 5 : index
    %c0_134 = arith.constant 0 : index
    %c0_135 = arith.constant 0 : index
    %230 = vector.load %arg8[%c5_133, %c0_134, %c0_135] : memref<10x8x128xf32, #tpu.memory_space<vmem>>, vector<1x8x128xf32>
    %231 = vector.shape_cast %230 : vector<1x8x128xf32> to vector<8x128xf32>
    %232 = vector.shape_cast %223 : vector<8x128xf32> to vector<1x8x128xf32>
    tpu.vector_store %arg8[%c5_133, %c0_134, %c0_135], %232 {strides = array<i32>} : memref<10x8x128xf32, #tpu.memory_space<vmem>>, vector<1x8x128xf32>,
    %c6 = arith.constant 6 : index
    %c0_136 = arith.constant 0 : index
    %c0_137 = arith.constant 0 : index
    %233 = vector.load %arg1[%c6, %c0_136, %c0_137] : memref<10x8x128xf32, #tpu.memory_space<vmem>>, vector<1x8x128xf32>
    %234 = vector.shape_cast %233 : vector<1x8x128xf32> to vector<8x128xf32>
    %cst_138 = arith.constant 8.500000e-01 : f32
    %235 = vector.broadcast %cst_138 : f32 to vector<8x128xf32>
    %236 = arith.mulf %235, %202 : vector<8x128xf32>
    %cst_139 = arith.constant 6.66666651 : f32
    %237 = vector.broadcast %cst_139 : f32 to vector<8x128xf32>
    %238 = arith.mulf %237, %234 : vector<8x128xf32>
    %239 = arith.addf %236, %238 : vector<8x128xf32>
    %cst_140 = arith.constant 0.899999976 : f32
    %240 = vector.broadcast %cst_140 : f32 to vector<8x128xf32>
    %241 = arith.mulf %240, %207 : vector<8x128xf32>
    %cst_141 = arith.constant 1.000000e+01 : f32
    %242 = vector.broadcast %cst_141 : f32 to vector<8x128xf32>
    %243 = arith.mulf %242, %202 : vector<8x128xf32>
    %244 = arith.addf %241, %243 : vector<8x128xf32>
    %cst_142 = arith.constant 6.500000e-01 : f32
    %245 = vector.broadcast %cst_142 : f32 to vector<8x128xf32>
    %246 = arith.mulf %245, %212 : vector<8x128xf32>
    %cst_143 = arith.constant 1.000000e+00 : f32
    %247 = vector.broadcast %cst_143 : f32 to vector<8x128xf32>
    %248 = arith.mulf %220, %247 : vector<8x128xf32>
    %249 = arith.subf %246, %248 : vector<8x128xf32>
    %cst_144 = arith.constant dense<0.000000e+00> : vector<8x128xf32>
    %250 = tpu.matmul %244, %7, %cst_144 {dimension_numbers = #tpu.dot_dimension_numbers<[1], [0], [0], [1], [0, 0, 1, 1], [], []>} : vector<8x128xf32>, vector<128x128xf32>, vector<8x128xf32> -> vector<8x128xf32>
    %251 = vector.broadcast %8 : vector<1x128xf32> to vector<8x128xf32>
    %252 = arith.addf %250, %251 : vector<8x128xf32>
    %253 = arith.addf %252, %249 : vector<8x128xf32>
    %cst_145 = arith.constant 1.000000e+01 : f32
    %254 = vector.broadcast %cst_145 : f32 to vector<8x128xf32>
    %255 = arith.cmpf oge, %253, %254 : vector<8x128xf32>
    %256 = arith.extui %255 : vector<8x128xi1> to vector<8x128xi32>
    %257 = arith.sitofp %256 : vector<8x128xi32> to vector<8x128xf32>
    %cst_146 = arith.constant dense<0.000000e+00> : vector<8x128xf32>
    %258 = tpu.matmul %257, %9, %cst_146 {dimension_numbers = #tpu.dot_dimension_numbers<[1], [0], [0], [1], [0, 0, 1, 1], [], []>} : vector<8x128xf32>, vector<128x128xf32>, vector<8x128xf32> -> vector<8x128xf32>
    %259 = vector.broadcast %10 : vector<1x128xf32> to vector<8x128xf32>
    %260 = arith.addf %258, %259 : vector<8x128xf32>
    %c6_147 = arith.constant 6 : index
    %c0_148 = arith.constant 0 : index
    %c0_149 = arith.constant 0 : index
    %261 = vector.load %arg6[%c6_147, %c0_148, %c0_149] : memref<10x8x128xf32, #tpu.memory_space<vmem>>, vector<1x8x128xf32>
    %262 = vector.shape_cast %261 : vector<1x8x128xf32> to vector<8x128xf32>
    %263 = vector.shape_cast %257 : vector<8x128xf32> to vector<1x8x128xf32>
    tpu.vector_store %arg6[%c6_147, %c0_148, %c0_149], %263 {strides = array<i32>} : memref<10x8x128xf32, #tpu.memory_space<vmem>>, vector<1x8x128xf32>,
    %c6_150 = arith.constant 6 : index
    %c0_151 = arith.constant 0 : index
    %c0_152 = arith.constant 0 : index
    %264 = vector.load %arg7[%c6_150, %c0_151, %c0_152] : memref<10x8x128xf32, #tpu.memory_space<vmem>>, vector<1x8x128xf32>
    %265 = vector.shape_cast %264 : vector<1x8x128xf32> to vector<8x128xf32>
    %266 = vector.shape_cast %253 : vector<8x128xf32> to vector<1x8x128xf32>
    tpu.vector_store %arg7[%c6_150, %c0_151, %c0_152], %266 {strides = array<i32>} : memref<10x8x128xf32, #tpu.memory_space<vmem>>, vector<1x8x128xf32>,
    %c6_153 = arith.constant 6 : index
    %c0_154 = arith.constant 0 : index
    %c0_155 = arith.constant 0 : index
    %267 = vector.load %arg8[%c6_153, %c0_154, %c0_155] : memref<10x8x128xf32, #tpu.memory_space<vmem>>, vector<1x8x128xf32>
    %268 = vector.shape_cast %267 : vector<1x8x128xf32> to vector<8x128xf32>
    %269 = vector.shape_cast %260 : vector<8x128xf32> to vector<1x8x128xf32>
    tpu.vector_store %arg8[%c6_153, %c0_154, %c0_155], %269 {strides = array<i32>} : memref<10x8x128xf32, #tpu.memory_space<vmem>>, vector<1x8x128xf32>,
    %c7 = arith.constant 7 : index
    %c0_156 = arith.constant 0 : index
    %c0_157 = arith.constant 0 : index
    %270 = vector.load %arg1[%c7, %c0_156, %c0_157] : memref<10x8x128xf32, #tpu.memory_space<vmem>>, vector<1x8x128xf32>
    %271 = vector.shape_cast %270 : vector<1x8x128xf32> to vector<8x128xf32>
    %cst_158 = arith.constant 8.500000e-01 : f32
    %272 = vector.broadcast %cst_158 : f32 to vector<8x128xf32>
    %273 = arith.mulf %272, %239 : vector<8x128xf32>
    %cst_159 = arith.constant 6.66666651 : f32
    %274 = vector.broadcast %cst_159 : f32 to vector<8x128xf32>
    %275 = arith.mulf %274, %271 : vector<8x128xf32>
    %276 = arith.addf %273, %275 : vector<8x128xf32>
    %cst_160 = arith.constant 0.899999976 : f32
    %277 = vector.broadcast %cst_160 : f32 to vector<8x128xf32>
    %278 = arith.mulf %277, %244 : vector<8x128xf32>
    %cst_161 = arith.constant 1.000000e+01 : f32
    %279 = vector.broadcast %cst_161 : f32 to vector<8x128xf32>
    %280 = arith.mulf %279, %239 : vector<8x128xf32>
    %281 = arith.addf %278, %280 : vector<8x128xf32>
    %cst_162 = arith.constant 6.500000e-01 : f32
    %282 = vector.broadcast %cst_162 : f32 to vector<8x128xf32>
    %283 = arith.mulf %282, %249 : vector<8x128xf32>
    %cst_163 = arith.constant 1.000000e+00 : f32
    %284 = vector.broadcast %cst_163 : f32 to vector<8x128xf32>
    %285 = arith.mulf %257, %284 : vector<8x128xf32>
    %286 = arith.subf %283, %285 : vector<8x128xf32>
    %cst_164 = arith.constant dense<0.000000e+00> : vector<8x128xf32>
    %287 = tpu.matmul %281, %7, %cst_164 {dimension_numbers = #tpu.dot_dimension_numbers<[1], [0], [0], [1], [0, 0, 1, 1], [], []>} : vector<8x128xf32>, vector<128x128xf32>, vector<8x128xf32> -> vector<8x128xf32>
    %288 = vector.broadcast %8 : vector<1x128xf32> to vector<8x128xf32>
    %289 = arith.addf %287, %288 : vector<8x128xf32>
    %290 = arith.addf %289, %286 : vector<8x128xf32>
    %cst_165 = arith.constant 1.000000e+01 : f32
    %291 = vector.broadcast %cst_165 : f32 to vector<8x128xf32>
    %292 = arith.cmpf oge, %290, %291 : vector<8x128xf32>
    %293 = arith.extui %292 : vector<8x128xi1> to vector<8x128xi32>
    %294 = arith.sitofp %293 : vector<8x128xi32> to vector<8x128xf32>
    %cst_166 = arith.constant dense<0.000000e+00> : vector<8x128xf32>
    %295 = tpu.matmul %294, %9, %cst_166 {dimension_numbers = #tpu.dot_dimension_numbers<[1], [0], [0], [1], [0, 0, 1, 1], [], []>} : vector<8x128xf32>, vector<128x128xf32>, vector<8x128xf32> -> vector<8x128xf32>
    %296 = vector.broadcast %10 : vector<1x128xf32> to vector<8x128xf32>
    %297 = arith.addf %295, %296 : vector<8x128xf32>
    %c7_167 = arith.constant 7 : index
    %c0_168 = arith.constant 0 : index
    %c0_169 = arith.constant 0 : index
    %298 = vector.load %arg6[%c7_167, %c0_168, %c0_169] : memref<10x8x128xf32, #tpu.memory_space<vmem>>, vector<1x8x128xf32>
    %299 = vector.shape_cast %298 : vector<1x8x128xf32> to vector<8x128xf32>
    %300 = vector.shape_cast %294 : vector<8x128xf32> to vector<1x8x128xf32>
    tpu.vector_store %arg6[%c7_167, %c0_168, %c0_169], %300 {strides = array<i32>} : memref<10x8x128xf32, #tpu.memory_space<vmem>>, vector<1x8x128xf32>,
    %c7_170 = arith.constant 7 : index
    %c0_171 = arith.constant 0 : index
    %c0_172 = arith.constant 0 : index
    %301 = vector.load %arg7[%c7_170, %c0_171, %c0_172] : memref<10x8x128xf32, #tpu.memory_space<vmem>>, vector<1x8x128xf32>
    %302 = vector.shape_cast %301 : vector<1x8x128xf32> to vector<8x128xf32>
    %303 = vector.shape_cast %290 : vector<8x128xf32> to vector<1x8x128xf32>
    tpu.vector_store %arg7[%c7_170, %c0_171, %c0_172], %303 {strides = array<i32>} : memref<10x8x128xf32, #tpu.memory_space<vmem>>, vector<1x8x128xf32>,
    %c7_173 = arith.constant 7 : index
    %c0_174 = arith.constant 0 : index
    %c0_175 = arith.constant 0 : index
    %304 = vector.load %arg8[%c7_173, %c0_174, %c0_175] : memref<10x8x128xf32, #tpu.memory_space<vmem>>, vector<1x8x128xf32>
    %305 = vector.shape_cast %304 : vector<1x8x128xf32> to vector<8x128xf32>
    %306 = vector.shape_cast %297 : vector<8x128xf32> to vector<1x8x128xf32>
    tpu.vector_store %arg8[%c7_173, %c0_174, %c0_175], %306 {strides = array<i32>} : memref<10x8x128xf32, #tpu.memory_space<vmem>>, vector<1x8x128xf32>,
    %c8 = arith.constant 8 : index
    %c0_176 = arith.constant 0 : index
    %c0_177 = arith.constant 0 : index
    %307 = vector.load %arg1[%c8, %c0_176, %c0_177] : memref<10x8x128xf32, #tpu.memory_space<vmem>>, vector<1x8x128xf32>
    %308 = vector.shape_cast %307 : vector<1x8x128xf32> to vector<8x128xf32>
    %cst_178 = arith.constant 8.500000e-01 : f32
    %309 = vector.broadcast %cst_178 : f32 to vector<8x128xf32>
    %310 = arith.mulf %309, %276 : vector<8x128xf32>
    %cst_179 = arith.constant 6.66666651 : f32
    %311 = vector.broadcast %cst_179 : f32 to vector<8x128xf32>
    %312 = arith.mulf %311, %308 : vector<8x128xf32>
    %313 = arith.addf %310, %312 : vector<8x128xf32>
    %cst_180 = arith.constant 0.899999976 : f32
    %314 = vector.broadcast %cst_180 : f32 to vector<8x128xf32>
    %315 = arith.mulf %314, %281 : vector<8x128xf32>
    %cst_181 = arith.constant 1.000000e+01 : f32
    %316 = vector.broadcast %cst_181 : f32 to vector<8x128xf32>
    %317 = arith.mulf %316, %276 : vector<8x128xf32>
    %318 = arith.addf %315, %317 : vector<8x128xf32>
    %cst_182 = arith.constant 6.500000e-01 : f32
    %319 = vector.broadcast %cst_182 : f32 to vector<8x128xf32>
    %320 = arith.mulf %319, %286 : vector<8x128xf32>
    %cst_183 = arith.constant 1.000000e+00 : f32
    %321 = vector.broadcast %cst_183 : f32 to vector<8x128xf32>
    %322 = arith.mulf %294, %321 : vector<8x128xf32>
    %323 = arith.subf %320, %322 : vector<8x128xf32>
    %cst_184 = arith.constant dense<0.000000e+00> : vector<8x128xf32>
    %324 = tpu.matmul %318, %7, %cst_184 {dimension_numbers = #tpu.dot_dimension_numbers<[1], [0], [0], [1], [0, 0, 1, 1], [], []>} : vector<8x128xf32>, vector<128x128xf32>, vector<8x128xf32> -> vector<8x128xf32>
    %325 = vector.broadcast %8 : vector<1x128xf32> to vector<8x128xf32>
    %326 = arith.addf %324, %325 : vector<8x128xf32>
    %327 = arith.addf %326, %323 : vector<8x128xf32>
    %cst_185 = arith.constant 1.000000e+01 : f32
    %328 = vector.broadcast %cst_185 : f32 to vector<8x128xf32>
    %329 = arith.cmpf oge, %327, %328 : vector<8x128xf32>
    %330 = arith.extui %329 : vector<8x128xi1> to vector<8x128xi32>
    %331 = arith.sitofp %330 : vector<8x128xi32> to vector<8x128xf32>
    %cst_186 = arith.constant dense<0.000000e+00> : vector<8x128xf32>
    %332 = tpu.matmul %331, %9, %cst_186 {dimension_numbers = #tpu.dot_dimension_numbers<[1], [0], [0], [1], [0, 0, 1, 1], [], []>} : vector<8x128xf32>, vector<128x128xf32>, vector<8x128xf32> -> vector<8x128xf32>
    %333 = vector.broadcast %10 : vector<1x128xf32> to vector<8x128xf32>
    %334 = arith.addf %332, %333 : vector<8x128xf32>
    %c8_187 = arith.constant 8 : index
    %c0_188 = arith.constant 0 : index
    %c0_189 = arith.constant 0 : index
    %335 = vector.load %arg6[%c8_187, %c0_188, %c0_189] : memref<10x8x128xf32, #tpu.memory_space<vmem>>, vector<1x8x128xf32>
    %336 = vector.shape_cast %335 : vector<1x8x128xf32> to vector<8x128xf32>
    %337 = vector.shape_cast %331 : vector<8x128xf32> to vector<1x8x128xf32>
    tpu.vector_store %arg6[%c8_187, %c0_188, %c0_189], %337 {strides = array<i32>} : memref<10x8x128xf32, #tpu.memory_space<vmem>>, vector<1x8x128xf32>,
    %c8_190 = arith.constant 8 : index
    %c0_191 = arith.constant 0 : index
    %c0_192 = arith.constant 0 : index
    %338 = vector.load %arg7[%c8_190, %c0_191, %c0_192] : memref<10x8x128xf32, #tpu.memory_space<vmem>>, vector<1x8x128xf32>
    %339 = vector.shape_cast %338 : vector<1x8x128xf32> to vector<8x128xf32>
    %340 = vector.shape_cast %327 : vector<8x128xf32> to vector<1x8x128xf32>
    tpu.vector_store %arg7[%c8_190, %c0_191, %c0_192], %340 {strides = array<i32>} : memref<10x8x128xf32, #tpu.memory_space<vmem>>, vector<1x8x128xf32>,
    %c8_193 = arith.constant 8 : index
    %c0_194 = arith.constant 0 : index
    %c0_195 = arith.constant 0 : index
    %341 = vector.load %arg8[%c8_193, %c0_194, %c0_195] : memref<10x8x128xf32, #tpu.memory_space<vmem>>, vector<1x8x128xf32>
    %342 = vector.shape_cast %341 : vector<1x8x128xf32> to vector<8x128xf32>
    %343 = vector.shape_cast %334 : vector<8x128xf32> to vector<1x8x128xf32>
    tpu.vector_store %arg8[%c8_193, %c0_194, %c0_195], %343 {strides = array<i32>} : memref<10x8x128xf32, #tpu.memory_space<vmem>>, vector<1x8x128xf32>,
    %c9 = arith.constant 9 : index
    %c0_196 = arith.constant 0 : index
    %c0_197 = arith.constant 0 : index
    %344 = vector.load %arg1[%c9, %c0_196, %c0_197] : memref<10x8x128xf32, #tpu.memory_space<vmem>>, vector<1x8x128xf32>
    %345 = vector.shape_cast %344 : vector<1x8x128xf32> to vector<8x128xf32>
    %cst_198 = arith.constant 8.500000e-01 : f32
    %346 = vector.broadcast %cst_198 : f32 to vector<8x128xf32>
    %347 = arith.mulf %346, %313 : vector<8x128xf32>
    %cst_199 = arith.constant 6.66666651 : f32
    %348 = vector.broadcast %cst_199 : f32 to vector<8x128xf32>
    %349 = arith.mulf %348, %345 : vector<8x128xf32>
    %350 = arith.addf %347, %349 : vector<8x128xf32>
    %cst_200 = arith.constant 0.899999976 : f32
    %351 = vector.broadcast %cst_200 : f32 to vector<8x128xf32>
    %352 = arith.mulf %351, %318 : vector<8x128xf32>
    %cst_201 = arith.constant 1.000000e+01 : f32
    %353 = vector.broadcast %cst_201 : f32 to vector<8x128xf32>
    %354 = arith.mulf %353, %313 : vector<8x128xf32>
    %355 = arith.addf %352, %354 : vector<8x128xf32>
    %cst_202 = arith.constant 6.500000e-01 : f32
    %356 = vector.broadcast %cst_202 : f32 to vector<8x128xf32>
    %357 = arith.mulf %356, %323 : vector<8x128xf32>
    %cst_203 = arith.constant 1.000000e+00 : f32
    %358 = vector.broadcast %cst_203 : f32 to vector<8x128xf32>
    %359 = arith.mulf %331, %358 : vector<8x128xf32>
    %360 = arith.subf %357, %359 : vector<8x128xf32>
    %cst_204 = arith.constant dense<0.000000e+00> : vector<8x128xf32>
    %361 = tpu.matmul %355, %7, %cst_204 {dimension_numbers = #tpu.dot_dimension_numbers<[1], [0], [0], [1], [0, 0, 1, 1], [], []>} : vector<8x128xf32>, vector<128x128xf32>, vector<8x128xf32> -> vector<8x128xf32>
    %362 = vector.broadcast %8 : vector<1x128xf32> to vector<8x128xf32>
    %363 = arith.addf %361, %362 : vector<8x128xf32>
    %364 = arith.addf %363, %360 : vector<8x128xf32>
    %cst_205 = arith.constant 1.000000e+01 : f32
    %365 = vector.broadcast %cst_205 : f32 to vector<8x128xf32>
    %366 = arith.cmpf oge, %364, %365 : vector<8x128xf32>
    %367 = arith.extui %366 : vector<8x128xi1> to vector<8x128xi32>
    %368 = arith.sitofp %367 : vector<8x128xi32> to vector<8x128xf32>
    %cst_206 = arith.constant dense<0.000000e+00> : vector<8x128xf32>
    %369 = tpu.matmul %368, %9, %cst_206 {dimension_numbers = #tpu.dot_dimension_numbers<[1], [0], [0], [1], [0, 0, 1, 1], [], []>} : vector<8x128xf32>, vector<128x128xf32>, vector<8x128xf32> -> vector<8x128xf32>
    %370 = vector.broadcast %10 : vector<1x128xf32> to vector<8x128xf32>
    %371 = arith.addf %369, %370 : vector<8x128xf32>
    %c9_207 = arith.constant 9 : index
    %c0_208 = arith.constant 0 : index
    %c0_209 = arith.constant 0 : index
    %372 = vector.load %arg6[%c9_207, %c0_208, %c0_209] : memref<10x8x128xf32, #tpu.memory_space<vmem>>, vector<1x8x128xf32>
    %373 = vector.shape_cast %372 : vector<1x8x128xf32> to vector<8x128xf32>
    %374 = vector.shape_cast %368 : vector<8x128xf32> to vector<1x8x128xf32>
    tpu.vector_store %arg6[%c9_207, %c0_208, %c0_209], %374 {strides = array<i32>} : memref<10x8x128xf32, #tpu.memory_space<vmem>>, vector<1x8x128xf32>,
    %c9_210 = arith.constant 9 : index
    %c0_211 = arith.constant 0 : index
    %c0_212 = arith.constant 0 : index
    %375 = vector.load %arg7[%c9_210, %c0_211, %c0_212] : memref<10x8x128xf32, #tpu.memory_space<vmem>>, vector<1x8x128xf32>
    %376 = vector.shape_cast %375 : vector<1x8x128xf32> to vector<8x128xf32>
    %377 = vector.shape_cast %364 : vector<8x128xf32> to vector<1x8x128xf32>
    tpu.vector_store %arg7[%c9_210, %c0_211, %c0_212], %377 {strides = array<i32>} : memref<10x8x128xf32, #tpu.memory_space<vmem>>, vector<1x8x128xf32>,
    %c9_213 = arith.constant 9 : index
    %c0_214 = arith.constant 0 : index
    %c0_215 = arith.constant 0 : index
    %378 = vector.load %arg8[%c9_213, %c0_214, %c0_215] : memref<10x8x128xf32, #tpu.memory_space<vmem>>, vector<1x8x128xf32>
    %379 = vector.shape_cast %378 : vector<1x8x128xf32> to vector<8x128xf32>
    %380 = vector.shape_cast %371 : vector<8x128xf32> to vector<1x8x128xf32>
    tpu.vector_store %arg8[%c9_213, %c0_214, %c0_215], %380 {strides = array<i32>} : memref<10x8x128xf32, #tpu.memory_space<vmem>>, vector<1x8x128xf32>,
    %c0_216 = arith.constant 0 : index
    %c0_217 = arith.constant 0 : index
    %381 = vector.load %arg9[%c0_216, %c0_217] : memref<8x128xf32, #tpu.memory_space<vmem>>, vector<8x128xf32>
    tpu.vector_store %arg9[%c0_216, %c0_217], %355 {strides = array<i32>} : memref<8x128xf32, #tpu.memory_space<vmem>>, vector<8x128xf32>,
    %c0_218 = arith.constant 0 : index
    %c0_219 = arith.constant 0 : index
    %382 = vector.load %arg10[%c0_218, %c0_219] : memref<8x128xf32, #tpu.memory_space<vmem>>, vector<8x128xf32>
    tpu.vector_store %arg10[%c0_218, %c0_219], %350 {strides = array<i32>} : memref<8x128xf32, #tpu.memory_space<vmem>>, vector<8x128xf32>,
    %c0_220 = arith.constant 0 : index
    %c0_221 = arith.constant 0 : index
    %383 = vector.load %arg11[%c0_220, %c0_221] : memref<8x128xf32, #tpu.memory_space<vmem>>, vector<8x128xf32>
    tpu.vector_store %arg11[%c0_220, %c0_221], %360 {strides = array<i32>} : memref<8x128xf32, #tpu.memory_space<vmem>>, vector<8x128xf32>,
    %c0_222 = arith.constant 0 : index
    %c0_223 = arith.constant 0 : index
    %384 = vector.load %arg12[%c0_222, %c0_223] : memref<8x128xf32, #tpu.memory_space<vmem>>, vector<8x128xf32>
    tpu.vector_store %arg12[%c0_222, %c0_223], %368 {strides = array<i32>} : memref<8x128xf32, #tpu.memory_space<vmem>>, vector<8x128xf32>,
    return
  }
  func.func @transform_0(%arg0: i32) -> (i32, i32, i32) {
    %c0_i32 = arith.constant 0 : i32
    %c0_i32_0 = arith.constant 0 : i32
    %c0_i32_1 = arith.constant 0 : i32
    return %arg0, %c0_i32, %c0_i32_0 : i32, i32, i32
  }
  func.func @transform_1(%arg0: i32) -> (i32, i32) {
    %c0_i32 = arith.constant 0 : i32
    %c0_i32_0 = arith.constant 0 : i32
    %c0_i32_1 = arith.constant 0 : i32
    return %c0_i32, %c0_i32_0 : i32, i32
  }
  func.func @transform_2(%arg0: i32) -> (i32, i32) {
    %c0_i32 = arith.constant 0 : i32
    %c0_i32_0 = arith.constant 0 : i32
    %c0_i32_1 = arith.constant 0 : i32
    return %c0_i32, %c0_i32_0 : i32, i32
  }
  func.func @transform_3(%arg0: i32) -> (i32, i32) {
    %c0_i32 = arith.constant 0 : i32
    %c0_i32_0 = arith.constant 0 : i32
    %c0_i32_1 = arith.constant 0 : i32
    return %c0_i32, %c0_i32_0 : i32, i32
  }
  func.func @transform_4(%arg0: i32) -> (i32, i32) {
    %c0_i32 = arith.constant 0 : i32
    %c0_i32_0 = arith.constant 0 : i32
    %c0_i32_1 = arith.constant 0 : i32
    return %c0_i32, %c0_i32_0 : i32, i32
  }
  func.func @transform_5(%arg0: i32) -> (i32, i32, i32) {
    %c0_i32 = arith.constant 0 : i32
    %c0_i32_0 = arith.constant 0 : i32
    %c0_i32_1 = arith.constant 0 : i32
    return %arg0, %c0_i32, %c0_i32_0 : i32, i32, i32
  }
  func.func @transform_6(%arg0: i32) -> (i32, i32, i32) {
    %c0_i32 = arith.constant 0 : i32
    %c0_i32_0 = arith.constant 0 : i32
    %c0_i32_1 = arith.constant 0 : i32
    return %arg0, %c0_i32, %c0_i32_0 : i32, i32, i32
  }
  func.func @transform_7(%arg0: i32) -> (i32, i32, i32) {
    %c0_i32 = arith.constant 0 : i32
    %c0_i32_0 = arith.constant 0 : i32
    %c0_i32_1 = arith.constant 0 : i32
    return %arg0, %c0_i32, %c0_i32_0 : i32, i32, i32
  }
}

</mosaic_0001>

<llo_original>
// kernel: decolle_forward_sequence.1
$region0: #{decolle_forward_sequence.1}
  #allocation0 [shape = 'u32[]', space=smem, size = 0x4, offset = 0x4, fixed_abs, tag = 'smem constant byte address 0x4 - core index']
  #allocation1 [shape = 'u32[72,128]{1,0:T(1,128)}', space=vmem, size = 0x9000, scoped, tag = 'internal scratch']
  #allocation2 [shape = 'f32[8,128]{1,0:T(8,128)}', space=vmem, size = 0x1000, scoped, tag = 'scratch operand']
  #allocation3 [shape = 'f32[8,128]{1,0:T(8,128)}', space=vmem, size = 0x1000, scoped, tag = 'scratch operand']
  #allocation4 [shape = 'f32[8,128]{1,0:T(8,128)}', space=vmem, size = 0x1000, scoped, tag = 'scratch operand']
  #allocation5 [shape = 'f32[8,128]{1,0:T(8,128)}', space=vmem, size = 0x1000, scoped, tag = 'scratch operand']
  %s0 = inlined_call_operand.vmem [shape: f32[10,8,128], index: 0, kind: input, shape index: {}]
  %s1 = inlined_call_operand.vmem [shape: f32[128,128], index: 1, kind: input, shape index: {}]
  %s2 = inlined_call_operand.vmem [shape: f32[1,128], index: 2, kind: input, shape index: {}]
  %s3 = inlined_call_operand.vmem [shape: f32[128,128], index: 3, kind: input, shape index: {}]
  %s4 = inlined_call_operand.vmem [shape: f32[1,128], index: 4, kind: input, shape index: {}]
  %s5 = inlined_call_operand.hbm [shape: f32[10,8,128], index: 5, kind: output, shape index: {0}]
  %s6 = inlined_call_operand.hbm [shape: f32[10,8,128], index: 6, kind: output, shape index: {1}]
  %s7 = inlined_call_operand.hbm [shape: f32[10,8,128], index: 7, kind: output, shape index: {2}]
  %8 = xla_tuple %s5, %s6, %s7
  %s9 = sld [smem:[#allocation0]]
  $region50: #{decolle_forward_sequence.1} parent=0
    _
  %s11 = ssub.s32 1, %s9
  %s12 = scalar_select 0, %s11, %s9
  $region1: #{decolle_forward_sequence.1} parent=0
    #allocation6 [shape = 'u8[40960]{0}', space=vmem, size = 0xa000, scoped, tag = 'output window, operand 0, single buffered']
    #allocation7 [shape = 's32[1]{0}', space=sflag, size = 0x4, scoped, tag = 'scoped memory for decolle_forward_sequence.1']
    #allocation8 [shape = 'u8[40960]{0}', space=vmem, size = 0xa000, scoped, tag = 'output window, operand 1, single buffered']
    #allocation9 [shape = 's32[1]{0}', space=sflag, size = 0x4, scoped, tag = 'scoped memory for decolle_forward_sequence.1']
    #allocation10 [shape = 'u8[40960]{0}', space=vmem, size = 0xa000, scoped, tag = 'output window, operand 2, single buffered']
    %13 = vsyncpa [#allocation7], 0
    %14 = vsyncpa [#allocation9], 0
    // Predicated region
    $region2: #{decolle_forward_sequence.1} parent=1 // pred_check
      _
    $region3: #{decolle_forward_sequence.1} parent=1 // pred_check_branch
      %16 = sbr.rel (0) target = $region5
    $region4: #{decolle_forward_sequence.1} parent=1 // pred_region
      _
    $region5: #{decolle_forward_sequence.1} parent=1 // pred_fallthru
      _
    // Predicated region
    $region6: #{decolle_forward_sequence.1} parent=1 // pred_check
      _
    $region7: #{decolle_forward_sequence.1} parent=1 // pred_check_branch
      %18 = sbr.rel (0) target = $region9
    $region8: #{decolle_forward_sequence.1} parent=1 // pred_region
      _
    $region9: #{decolle_forward_sequence.1} parent=1 // pred_fallthru
      _
    // Predicated region
    $region10: #{decolle_forward_sequence.1} parent=1 // pred_check
      _
    $region11: #{decolle_forward_sequence.1} parent=1 // pred_check_branch
      %20 = sbr.rel (0) target = $region13
    $region12: #{decolle_forward_sequence.1} parent=1 // pred_region
      _
    $region13: #{decolle_forward_sequence.1} parent=1 // pred_fallthru
      _
    // Predicated region
    $region14: #{decolle_forward_sequence.1} parent=1 // pred_check
      _
    $region15: #{decolle_forward_sequence.1} parent=1 // pred_check_branch
      %22 = sbr.rel (0) target = $region17
    $region16: #{decolle_forward_sequence.1} parent=1 // pred_region
      _
    $region17: #{decolle_forward_sequence.1} parent=1 // pred_fallthru
      _
    // Predicated region
    $region18: #{decolle_forward_sequence.1} parent=1 // pred_check
      _
    $region19: #{decolle_forward_sequence.1} parent=1 // pred_check_branch
      %24 = sbr.rel (0) target = $region21
    $region20: #{decolle_forward_sequence.1} parent=1 // pred_region
      _
    $region21: #{decolle_forward_sequence.1} parent=1 // pred_fallthru
      _
    %p25 = scmp.eq.s32.totalorder 0, 0
    // Predicated region
    $region22: #{decolle_forward_sequence.1} parent=1 // pred_check
      %p26 = pneg %p25
    $region23: #{decolle_forward_sequence.1} parent=1 // pred_check_branch
      %28 = sbr.rel (%p26) target = $region25
    $region24: #{decolle_forward_sequence.1} parent=1 // pred_region
      %29 = vst [vmem:[#allocation2] sm:$0xff] 0.0
      %30 = vst [vmem:[#allocation3] sm:$0xff] 0.0
      %31 = vst [vmem:[#allocation4] sm:$0xff] 0.0
      %32 = vst [vmem:[#allocation5] sm:$0xff] 0.0
    $region25: #{decolle_forward_sequence.1} parent=1 // pred_fallthru
      _
    %v33 = vld [vmem:[#allocation2] sm:$0xff]
    %v34 = vld [vmem:[#allocation3] sm:$0xff]
    %v35 = vld [vmem:[#allocation4] sm:$0xff]
    %v36 = vld [vmem:[#allocation5] sm:$0xff]
    %v37 = vld [vmem:[%s1] sm:$0xff]
    %v38 = vld [vmem:[%s1 + $0x8] sm:$0xff]
    %v39 = vld [vmem:[%s1 + $0x10] sm:$0xff]
    %v40 = vld [vmem:[%s1 + $0x18] sm:$0xff]
    %v41 = vld [vmem:[%s1 + $0x20] sm:$0xff]
    %v42 = vld [vmem:[%s1 + $0x28] sm:$0xff]
    %v43 = vld [vmem:[%s1 + $0x30] sm:$0xff]
    %v44 = vld [vmem:[%s1 + $0x38] sm:$0xff]
    %v45 = vld [vmem:[%s1 + $0x40] sm:$0xff]
    %v46 = vld [vmem:[%s1 + $0x48] sm:$0xff]
    %v47 = vld [vmem:[%s1 + $0x50] sm:$0xff]
    %v48 = vld [vmem:[%s1 + $0x58] sm:$0xff]
    %v49 = vld [vmem:[%s1 + $0x60] sm:$0xff]
    %v50 = vld [vmem:[%s1 + $0x68] sm:$0xff]
    %v51 = vld [vmem:[%s1 + $0x70] sm:$0xff]
    %v52 = vld [vmem:[%s1 + $0x78] sm:$0xff]
    %v53 = vld [vmem:[%s2] sm:$0x1]
    %v54 = vld [vmem:[%s3] sm:$0xff]
    %v55 = vld [vmem:[%s3 + $0x8] sm:$0xff]
    %v56 = vld [vmem:[%s3 + $0x10] sm:$0xff]
    %v57 = vld [vmem:[%s3 + $0x18] sm:$0xff]
    %v58 = vld [vmem:[%s3 + $0x20] sm:$0xff]
    %v59 = vld [vmem:[%s3 + $0x28] sm:$0xff]
    %v60 = vld [vmem:[%s3 + $0x30] sm:$0xff]
    %v61 = vld [vmem:[%s3 + $0x38] sm:$0xff]
    %v62 = vld [vmem:[%s3 + $0x40] sm:$0xff]
    %v63 = vld [vmem:[%s3 + $0x48] sm:$0xff]
    %v64 = vld [vmem:[%s3 + $0x50] sm:$0xff]
    %v65 = vld [vmem:[%s3 + $0x58] sm:$0xff]
    %v66 = vld [vmem:[%s3 + $0x60] sm:$0xff]
    %v67 = vld [vmem:[%s3 + $0x68] sm:$0xff]
    %v68 = vld [vmem:[%s3 + $0x70] sm:$0xff]
    %v69 = vld [vmem:[%s3 + $0x78] sm:$0xff]
    %v70 = vld [vmem:[%s4] sm:$0x1]
    %v71 = vld [vmem:[%s0] sm:$0xff]
    %v72 = vmul.f32 %v34, 0.85
    %v73 = vmul.f32 %v71, 6.6666665
    %v74 = vadd.f32 %v72, %v73
    %v75 = vmul.f32 %v33, 0.9
    %v76 = vmul.f32 %v34, 10.0
    %v77 = vadd.f32 %v75, %v76
    %v78 = vmul.f32 %v35, 0.65
    %v79 = vsub.f32 %v78, %v36
    %v81 = vperm.slane %v53, 0
    %83 = vmatpush.msra.mxu0 %v52
    %84 = vmatpush.msra.mxu0 %v51
    %85 = vmatpush.msra.mxu0 %v50
    %86 = vmatpush.msra.mxu0 %v49
    %87 = vmatpush.msra.mxu0 %v48
    %88 = vmatpush.msra.mxu0 %v47
    %89 = vmatpush.msra.mxu0 %v46
    %90 = vmatpush.msra.mxu0 %v45
    %91 = vmatpush.msra.mxu0 %v44
    %92 = vmatpush.msra.mxu0 %v43
    %93 = vmatpush.msra.mxu0 %v42
    %94 = vmatpush.msra.mxu0 %v41
    %95 = vmatpush.msra.mxu0 %v40
    %96 = vmatpush.msra.mxu0 %v39
    %97 = vmatpush.msra.mxu0 %v38
    %98 = vmatpush.msra.mxu0 %v37
    %99 = vmatmul.f32.gmra.mxu0 %v77
    %v100 = vpop.f32.mrf.mxu0
    %v101 = vadd.f32 %v81, %v100
    %102 = vdwg.mxu0
    %v103 = vadd.f32 %v101, %v79
    %vm104 = vcmp.ge.f32.partialorder %v103, 10.0
    %v105 = vsel %vm104, 1, 0
    %v106 = vcvt.s32.f32 %v105
    %v108 = vperm.slane %v70, 0
    %110 = vmatpush.msra.mxu0 %v69
    %111 = vmatpush.msra.mxu0 %v68
    %112 = vmatpush.msra.mxu0 %v67
    %113 = vmatpush.msra.mxu0 %v66
    %114 = vmatpush.msra.mxu0 %v65
    %115 = vmatpush.msra.mxu0 %v64
    %116 = vmatpush.msra.mxu0 %v63
    %117 = vmatpush.msra.mxu0 %v62
    %118 = vmatpush.msra.mxu0 %v61
    %119 = vmatpush.msra.mxu0 %v60
    %120 = vmatpush.msra.mxu0 %v59
    %121 = vmatpush.msra.mxu0 %v58
    %122 = vmatpush.msra.mxu0 %v57
    %123 = vmatpush.msra.mxu0 %v56
    %124 = vmatpush.msra.mxu0 %v55
    %125 = vmatpush.msra.mxu0 %v54
    %126 = vmatmul.f32.gmra.mxu0 %v106
    %v127 = vpop.f32.mrf.mxu0
    %v128 = vadd.f32 %v108, %v127
    %129 = vdwg.mxu0
    %130 = vst [vmem:[#allocation6] sm:$0xff] %v106
    %131 = vst [vmem:[#allocation8] sm:$0xff] %v103
    %132 = vst [vmem:[#allocation10] sm:$0xff] %v128
    %s133 = scalar_lea.vmem %s0, 8
    %v134 = vld [vmem:[%s133] sm:$0xff]
    %v135 = vmul.f32 %v74, 0.85
    %v136 = vmul.f32 %v134, 6.6666665
    %v137 = vadd.f32 %v135, %v136
    %v138 = vmul.f32 %v77, 0.9
    %v139 = vmul.f32 %v74, 10.0
    %v140 = vadd.f32 %v138, %v139
    %v141 = vmul.f32 %v79, 0.65
    %v142 = vsub.f32 %v141, %v106
    %143 = vmatpush.msra.mxu0 %v52
    %144 = vmatpush.msra.mxu0 %v51
    %145 = vmatpush.msra.mxu0 %v50
    %146 = vmatpush.msra.mxu0 %v49
    %147 = vmatpush.msra.mxu0 %v48
    %148 = vmatpush.msra.mxu0 %v47
    %149 = vmatpush.msra.mxu0 %v46
    %150 = vmatpush.msra.mxu0 %v45
    %151 = vmatpush.msra.mxu0 %v44
    %152 = vmatpush.msra.mxu0 %v43
    %153 = vmatpush.msra.mxu0 %v42
    %154 = vmatpush.msra.mxu0 %v41
    %155 = vmatpush.msra.mxu0 %v40
    %156 = vmatpush.msra.mxu0 %v39
    %157 = vmatpush.msra.mxu0 %v38
    %158 = vmatpush.msra.mxu0 %v37
    %159 = vmatmul.f32.gmra.mxu0 %v140
    %v160 = vpop.f32.mrf.mxu0
    %v161 = vadd.f32 %v81, %v160
    %162 = vdwg.mxu0
    %v163 = vadd.f32 %v161, %v142
    %vm164 = vcmp.ge.f32.partialorder %v163, 10.0
    %v165 = vsel %vm164, 1, 0
    %v166 = vcvt.s32.f32 %v165
    %167 = vmatpush.msra.mxu0 %v69
    %168 = vmatpush.msra.mxu0 %v68
    %169 = vmatpush.msra.mxu0 %v67
    %170 = vmatpush.msra.mxu0 %v66
    %171 = vmatpush.msra.mxu0 %v65
    %172 = vmatpush.msra.mxu0 %v64
    %173 = vmatpush.msra.mxu0 %v63
    %174 = vmatpush.msra.mxu0 %v62
    %175 = vmatpush.msra.mxu0 %v61
    %176 = vmatpush.msra.mxu0 %v60
    %177 = vmatpush.msra.mxu0 %v59
    %178 = vmatpush.msra.mxu0 %v58
    %179 = vmatpush.msra.mxu0 %v57
    %180 = vmatpush.msra.mxu0 %v56
    %181 = vmatpush.msra.mxu0 %v55
    %182 = vmatpush.msra.mxu0 %v54
    %183 = vmatmul.f32.gmra.mxu0 %v166
    %v184 = vpop.f32.mrf.mxu0
    %v185 = vadd.f32 %v108, %v184
    %186 = vdwg.mxu0
    %s187 = scalar_lea.vmem [#allocation6], 8
    %188 = vst [vmem:[%s187] sm:$0xff] %v166
    %s189 = scalar_lea.vmem [#allocation8], 8
    %190 = vst [vmem:[%s189] sm:$0xff] %v163
    %s191 = scalar_lea.vmem [#allocation10], 8
    %192 = vst [vmem:[%s191] sm:$0xff] %v185
    %s193 = scalar_lea.vmem %s0, 16
    %v194 = vld [vmem:[%s193] sm:$0xff]
    %v195 = vmul.f32 %v137, 0.85
    %v196 = vmul.f32 %v194, 6.6666665
    %v197 = vadd.f32 %v195, %v196
    %v198 = vmul.f32 %v140, 0.9
    %v199 = vmul.f32 %v137, 10.0
    %v200 = vadd.f32 %v198, %v199
    %v201 = vmul.f32 %v142, 0.65
    %v202 = vsub.f32 %v201, %v166
    %203 = vmatpush.msra.mxu0 %v52
    %204 = vmatpush.msra.mxu0 %v51
    %205 = vmatpush.msra.mxu0 %v50
    %206 = vmatpush.msra.mxu0 %v49
    %207 = vmatpush.msra.mxu0 %v48
    %208 = vmatpush.msra.mxu0 %v47
    %209 = vmatpush.msra.mxu0 %v46
    %210 = vmatpush.msra.mxu0 %v45
    %211 = vmatpush.msra.mxu0 %v44
    %212 = vmatpush.msra.mxu0 %v43
    %213 = vmatpush.msra.mxu0 %v42
    %214 = vmatpush.msra.mxu0 %v41
    %215 = vmatpush.msra.mxu0 %v40
    %216 = vmatpush.msra.mxu0 %v39
    %217 = vmatpush.msra.mxu0 %v38
    %218 = vmatpush.msra.mxu0 %v37
    %219 = vmatmul.f32.gmra.mxu0 %v200
    %v220 = vpop.f32.mrf.mxu0
    %v221 = vadd.f32 %v81, %v220
    %222 = vdwg.mxu0
    %v223 = vadd.f32 %v221, %v202
    %vm224 = vcmp.ge.f32.partialorder %v223, 10.0
    %v225 = vsel %vm224, 1, 0
    %v226 = vcvt.s32.f32 %v225
    %227 = vmatpush.msra.mxu0 %v69
    %228 = vmatpush.msra.mxu0 %v68
    %229 = vmatpush.msra.mxu0 %v67
    %230 = vmatpush.msra.mxu0 %v66
    %231 = vmatpush.msra.mxu0 %v65
    %232 = vmatpush.msra.mxu0 %v64
    %233 = vmatpush.msra.mxu0 %v63
    %234 = vmatpush.msra.mxu0 %v62
    %235 = vmatpush.msra.mxu0 %v61
    %236 = vmatpush.msra.mxu0 %v60
    %237 = vmatpush.msra.mxu0 %v59
    %238 = vmatpush.msra.mxu0 %v58
    %239 = vmatpush.msra.mxu0 %v57
    %240 = vmatpush.msra.mxu0 %v56
    %241 = vmatpush.msra.mxu0 %v55
    %242 = vmatpush.msra.mxu0 %v54
    %243 = vmatmul.f32.gmra.mxu0 %v226
    %v244 = vpop.f32.mrf.mxu0
    %v245 = vadd.f32 %v108, %v244
    %246 = vdwg.mxu0
    %s247 = scalar_lea.vmem [#allocation6], 16
    %248 = vst [vmem:[%s247] sm:$0xff] %v226
    %s249 = scalar_lea.vmem [#allocation8], 16
    %250 = vst [vmem:[%s249] sm:$0xff] %v223
    %s251 = scalar_lea.vmem [#allocation10], 16
    %252 = vst [vmem:[%s251] sm:$0xff] %v245
    %s253 = scalar_lea.vmem %s0, 24
    %v254 = vld [vmem:[%s253] sm:$0xff]
    %v255 = vmul.f32 %v197, 0.85
    %v256 = vmul.f32 %v254, 6.6666665
    %v257 = vadd.f32 %v255, %v256
    %v258 = vmul.f32 %v200, 0.9
    %v259 = vmul.f32 %v197, 10.0
    %v260 = vadd.f32 %v258, %v259
    %v261 = vmul.f32 %v202, 0.65
    %v262 = vsub.f32 %v261, %v226
    %263 = vmatpush.msra.mxu0 %v52
    %264 = vmatpush.msra.mxu0 %v51
    %265 = vmatpush.msra.mxu0 %v50
    %266 = vmatpush.msra.mxu0 %v49
    %267 = vmatpush.msra.mxu0 %v48
    %268 = vmatpush.msra.mxu0 %v47
    %269 = vmatpush.msra.mxu0 %v46
    %270 = vmatpush.msra.mxu0 %v45
    %271 = vmatpush.msra.mxu0 %v44
    %272 = vmatpush.msra.mxu0 %v43
    %273 = vmatpush.msra.mxu0 %v42
    %274 = vmatpush.msra.mxu0 %v41
    %275 = vmatpush.msra.mxu0 %v40
    %276 = vmatpush.msra.mxu0 %v39
    %277 = vmatpush.msra.mxu0 %v38
    %278 = vmatpush.msra.mxu0 %v37
    %279 = vmatmul.f32.gmra.mxu0 %v260
    %v280 = vpop.f32.mrf.mxu0
    %v281 = vadd.f32 %v81, %v280
    %282 = vdwg.mxu0
    %v283 = vadd.f32 %v281, %v262
    %vm284 = vcmp.ge.f32.partialorder %v283, 10.0
    %v285 = vsel %vm284, 1, 0
    %v286 = vcvt.s32.f32 %v285
    %287 = vmatpush.msra.mxu0 %v69
    %288 = vmatpush.msra.mxu0 %v68
    %289 = vmatpush.msra.mxu0 %v67
    %290 = vmatpush.msra.mxu0 %v66
    %291 = vmatpush.msra.mxu0 %v65
    %292 = vmatpush.msra.mxu0 %v64
    %293 = vmatpush.msra.mxu0 %v63
    %294 = vmatpush.msra.mxu0 %v62
    %295 = vmatpush.msra.mxu0 %v61
    %296 = vmatpush.msra.mxu0 %v60
    %297 = vmatpush.msra.mxu0 %v59
    %298 = vmatpush.msra.mxu0 %v58
    %299 = vmatpush.msra.mxu0 %v57
    %300 = vmatpush.msra.mxu0 %v56
    %301 = vmatpush.msra.mxu0 %v55
    %302 = vmatpush.msra.mxu0 %v54
    %303 = vmatmul.f32.gmra.mxu0 %v286
    %v304 = vpop.f32.mrf.mxu0
    %v305 = vadd.f32 %v108, %v304
    %306 = vdwg.mxu0
    %s307 = scalar_lea.vmem [#allocation6], 24
    %308 = vst [vmem:[%s307] sm:$0xff] %v286
    %s309 = scalar_lea.vmem [#allocation8], 24
    %310 = vst [vmem:[%s309] sm:$0xff] %v283
    %s311 = scalar_lea.vmem [#allocation10], 24
    %312 = vst [vmem:[%s311] sm:$0xff] %v305
    %s313 = scalar_lea.vmem %s0, 32
    %v314 = vld [vmem:[%s313] sm:$0xff]
    %v315 = vmul.f32 %v257, 0.85
    %v316 = vmul.f32 %v314, 6.6666665
    %v317 = vadd.f32 %v315, %v316
    %v318 = vmul.f32 %v260, 0.9
    %v319 = vmul.f32 %v257, 10.0
    %v320 = vadd.f32 %v318, %v319
    %v321 = vmul.f32 %v262, 0.65
    %v322 = vsub.f32 %v321, %v286
    %323 = vmatpush.msra.mxu0 %v52
    %324 = vmatpush.msra.mxu0 %v51
    %325 = vmatpush.msra.mxu0 %v50
    %326 = vmatpush.msra.mxu0 %v49
    %327 = vmatpush.msra.mxu0 %v48
    %328 = vmatpush.msra.mxu0 %v47
    %329 = vmatpush.msra.mxu0 %v46
    %330 = vmatpush.msra.mxu0 %v45
    %331 = vmatpush.msra.mxu0 %v44
    %332 = vmatpush.msra.mxu0 %v43
    %333 = vmatpush.msra.mxu0 %v42
    %334 = vmatpush.msra.mxu0 %v41
    %335 = vmatpush.msra.mxu0 %v40
    %336 = vmatpush.msra.mxu0 %v39
    %337 = vmatpush.msra.mxu0 %v38
    %338 = vmatpush.msra.mxu0 %v37
    %339 = vmatmul.f32.gmra.mxu0 %v320
    %v340 = vpop.f32.mrf.mxu0
    %v341 = vadd.f32 %v81, %v340
    %342 = vdwg.mxu0
    %v343 = vadd.f32 %v341, %v322
    %vm344 = vcmp.ge.f32.partialorder %v343, 10.0
    %v345 = vsel %vm344, 1, 0
    %v346 = vcvt.s32.f32 %v345
    %347 = vmatpush.msra.mxu0 %v69
    %348 = vmatpush.msra.mxu0 %v68
    %349 = vmatpush.msra.mxu0 %v67
    %350 = vmatpush.msra.mxu0 %v66
    %351 = vmatpush.msra.mxu0 %v65
    %352 = vmatpush.msra.mxu0 %v64
    %353 = vmatpush.msra.mxu0 %v63
    %354 = vmatpush.msra.mxu0 %v62
    %355 = vmatpush.msra.mxu0 %v61
    %356 = vmatpush.msra.mxu0 %v60
    %357 = vmatpush.msra.mxu0 %v59
    %358 = vmatpush.msra.mxu0 %v58
    %359 = vmatpush.msra.mxu0 %v57
    %360 = vmatpush.msra.mxu0 %v56
    %361 = vmatpush.msra.mxu0 %v55
    %362 = vmatpush.msra.mxu0 %v54
    %363 = vmatmul.f32.gmra.mxu0 %v346
    %v364 = vpop.f32.mrf.mxu0
    %v365 = vadd.f32 %v108, %v364
    %366 = vdwg.mxu0
    %s367 = scalar_lea.vmem [#allocation6], 32
    %368 = vst [vmem:[%s367] sm:$0xff] %v346
    %s369 = scalar_lea.vmem [#allocation8], 32
    %370 = vst [vmem:[%s369] sm:$0xff] %v343
    %s371 = scalar_lea.vmem [#allocation10], 32
    %372 = vst [vmem:[%s371] sm:$0xff] %v365
    %s373 = scalar_lea.vmem %s0, 40
    %v374 = vld [vmem:[%s373] sm:$0xff]
    %v375 = vmul.f32 %v317, 0.85
    %v376 = vmul.f32 %v374, 6.6666665
    %v377 = vadd.f32 %v375, %v376
    %v378 = vmul.f32 %v320, 0.9
    %v379 = vmul.f32 %v317, 10.0
    %v380 = vadd.f32 %v378, %v379
    %v381 = vmul.f32 %v322, 0.65
    %v382 = vsub.f32 %v381, %v346
    %383 = vmatpush.msra.mxu0 %v52
    %384 = vmatpush.msra.mxu0 %v51
    %385 = vmatpush.msra.mxu0 %v50
    %386 = vmatpush.msra.mxu0 %v49
    %387 = vmatpush.msra.mxu0 %v48
    %388 = vmatpush.msra.mxu0 %v47
    %389 = vmatpush.msra.mxu0 %v46
    %390 = vmatpush.msra.mxu0 %v45
    %391 = vmatpush.msra.mxu0 %v44
    %392 = vmatpush.msra.mxu0 %v43
    %393 = vmatpush.msra.mxu0 %v42
    %394 = vmatpush.msra.mxu0 %v41
    %395 = vmatpush.msra.mxu0 %v40
    %396 = vmatpush.msra.mxu0 %v39
    %397 = vmatpush.msra.mxu0 %v38
    %398 = vmatpush.msra.mxu0 %v37
    %399 = vmatmul.f32.gmra.mxu0 %v380
    %v400 = vpop.f32.mrf.mxu0
    %v401 = vadd.f32 %v81, %v400
    %402 = vdwg.mxu0
    %v403 = vadd.f32 %v401, %v382
    %vm404 = vcmp.ge.f32.partialorder %v403, 10.0
    %v405 = vsel %vm404, 1, 0
    %v406 = vcvt.s32.f32 %v405
    %407 = vmatpush.msra.mxu0 %v69
    %408 = vmatpush.msra.mxu0 %v68
    %409 = vmatpush.msra.mxu0 %v67
    %410 = vmatpush.msra.mxu0 %v66
    %411 = vmatpush.msra.mxu0 %v65
    %412 = vmatpush.msra.mxu0 %v64
    %413 = vmatpush.msra.mxu0 %v63
    %414 = vmatpush.msra.mxu0 %v62
    %415 = vmatpush.msra.mxu0 %v61
    %416 = vmatpush.msra.mxu0 %v60
    %417 = vmatpush.msra.mxu0 %v59
    %418 = vmatpush.msra.mxu0 %v58
    %419 = vmatpush.msra.mxu0 %v57
    %420 = vmatpush.msra.mxu0 %v56
    %421 = vmatpush.msra.mxu0 %v55
    %422 = vmatpush.msra.mxu0 %v54
    %423 = vmatmul.f32.gmra.mxu0 %v406
    %v424 = vpop.f32.mrf.mxu0
    %v425 = vadd.f32 %v108, %v424
    %426 = vdwg.mxu0
    %s427 = scalar_lea.vmem [#allocation6], 40
    %428 = vst [vmem:[%s427] sm:$0xff] %v406
    %s429 = scalar_lea.vmem [#allocation8], 40
    %430 = vst [vmem:[%s429] sm:$0xff] %v403
    %s431 = scalar_lea.vmem [#allocation10], 40
    %432 = vst [vmem:[%s431] sm:$0xff] %v425
    %s433 = scalar_lea.vmem %s0, 48
    %v434 = vld [vmem:[%s433] sm:$0xff]
    %v435 = vmul.f32 %v377, 0.85
    %v436 = vmul.f32 %v434, 6.6666665
    %v437 = vadd.f32 %v435, %v436
    %v438 = vmul.f32 %v380, 0.9
    %v439 = vmul.f32 %v377, 10.0
    %v440 = vadd.f32 %v438, %v439
    %v441 = vmul.f32 %v382, 0.65
    %v442 = vsub.f32 %v441, %v406
    %443 = vmatpush.msra.mxu0 %v52
    %444 = vmatpush.msra.mxu0 %v51
    %445 = vmatpush.msra.mxu0 %v50
    %446 = vmatpush.msra.mxu0 %v49
    %447 = vmatpush.msra.mxu0 %v48
    %448 = vmatpush.msra.mxu0 %v47
    %449 = vmatpush.msra.mxu0 %v46
    %450 = vmatpush.msra.mxu0 %v45
    %451 = vmatpush.msra.mxu0 %v44
    %452 = vmatpush.msra.mxu0 %v43
    %453 = vmatpush.msra.mxu0 %v42
    %454 = vmatpush.msra.mxu0 %v41
    %455 = vmatpush.msra.mxu0 %v40
    %456 = vmatpush.msra.mxu0 %v39
    %457 = vmatpush.msra.mxu0 %v38
    %458 = vmatpush.msra.mxu0 %v37
    %459 = vmatmul.f32.gmra.mxu0 %v440
    %v460 = vpop.f32.mrf.mxu0
    %v461 = vadd.f32 %v81, %v460
    %462 = vdwg.mxu0
    %v463 = vadd.f32 %v461, %v442
    %vm464 = vcmp.ge.f32.partialorder %v463, 10.0
    %v465 = vsel %vm464, 1, 0
    %v466 = vcvt.s32.f32 %v465
    %467 = vmatpush.msra.mxu0 %v69
    %468 = vmatpush.msra.mxu0 %v68
    %469 = vmatpush.msra.mxu0 %v67
    %470 = vmatpush.msra.mxu0 %v66
    %471 = vmatpush.msra.mxu0 %v65
    %472 = vmatpush.msra.mxu0 %v64
    %473 = vmatpush.msra.mxu0 %v63
    %474 = vmatpush.msra.mxu0 %v62
    %475 = vmatpush.msra.mxu0 %v61
    %476 = vmatpush.msra.mxu0 %v60
    %477 = vmatpush.msra.mxu0 %v59
    %478 = vmatpush.msra.mxu0 %v58
    %479 = vmatpush.msra.mxu0 %v57
    %480 = vmatpush.msra.mxu0 %v56
    %481 = vmatpush.msra.mxu0 %v55
    %482 = vmatpush.msra.mxu0 %v54
    %483 = vmatmul.f32.gmra.mxu0 %v466
    %v484 = vpop.f32.mrf.mxu0
    %v485 = vadd.f32 %v108, %v484
    %486 = vdwg.mxu0
    %s487 = scalar_lea.vmem [#allocation6], 48
    %488 = vst [vmem:[%s487] sm:$0xff] %v466
    %s489 = scalar_lea.vmem [#allocation8], 48
    %490 = vst [vmem:[%s489] sm:$0xff] %v463
    %s491 = scalar_lea.vmem [#allocation10], 48
    %492 = vst [vmem:[%s491] sm:$0xff] %v485
    %s493 = scalar_lea.vmem %s0, 56
    %v494 = vld [vmem:[%s493] sm:$0xff]
    %v495 = vmul.f32 %v437, 0.85
    %v496 = vmul.f32 %v494, 6.6666665
    %v497 = vadd.f32 %v495, %v496
    %v498 = vmul.f32 %v440, 0.9
    %v499 = vmul.f32 %v437, 10.0
    %v500 = vadd.f32 %v498, %v499
    %v501 = vmul.f32 %v442, 0.65
    %v502 = vsub.f32 %v501, %v466
    %503 = vmatpush.msra.mxu0 %v52
    %504 = vmatpush.msra.mxu0 %v51
    %505 = vmatpush.msra.mxu0 %v50
    %506 = vmatpush.msra.mxu0 %v49
    %507 = vmatpush.msra.mxu0 %v48
    %508 = vmatpush.msra.mxu0 %v47
    %509 = vmatpush.msra.mxu0 %v46
    %510 = vmatpush.msra.mxu0 %v45
    %511 = vmatpush.msra.mxu0 %v44
    %512 = vmatpush.msra.mxu0 %v43
    %513 = vmatpush.msra.mxu0 %v42
    %514 = vmatpush.msra.mxu0 %v41
    %515 = vmatpush.msra.mxu0 %v40
    %516 = vmatpush.msra.mxu0 %v39
    %517 = vmatpush.msra.mxu0 %v38
    %518 = vmatpush.msra.mxu0 %v37
    %519 = vmatmul.f32.gmra.mxu0 %v500
    %v520 = vpop.f32.mrf.mxu0
    %v521 = vadd.f32 %v81, %v520
    %522 = vdwg.mxu0
    %v523 = vadd.f32 %v521, %v502
    %vm524 = vcmp.ge.f32.partialorder %v523, 10.0
    %v525 = vsel %vm524, 1, 0
    %v526 = vcvt.s32.f32 %v525
    %527 = vmatpush.msra.mxu0 %v69
    %528 = vmatpush.msra.mxu0 %v68
    %529 = vmatpush.msra.mxu0 %v67
    %530 = vmatpush.msra.mxu0 %v66
    %531 = vmatpush.msra.mxu0 %v65
    %532 = vmatpush.msra.mxu0 %v64
    %533 = vmatpush.msra.mxu0 %v63
    %534 = vmatpush.msra.mxu0 %v62
    %535 = vmatpush.msra.mxu0 %v61
    %536 = vmatpush.msra.mxu0 %v60
    %537 = vmatpush.msra.mxu0 %v59
    %538 = vmatpush.msra.mxu0 %v58
    %539 = vmatpush.msra.mxu0 %v57
    %540 = vmatpush.msra.mxu0 %v56
    %541 = vmatpush.msra.mxu0 %v55
    %542 = vmatpush.msra.mxu0 %v54
    %543 = vmatmul.f32.gmra.mxu0 %v526
    %v544 = vpop.f32.mrf.mxu0
    %v545 = vadd.f32 %v108, %v544
    %546 = vdwg.mxu0
    %s547 = scalar_lea.vmem [#allocation6], 56
    %548 = vst [vmem:[%s547] sm:$0xff] %v526
    %s549 = scalar_lea.vmem [#allocation8], 56
    %550 = vst [vmem:[%s549] sm:$0xff] %v523
    %s551 = scalar_lea.vmem [#allocation10], 56
    %552 = vst [vmem:[%s551] sm:$0xff] %v545
    %s553 = scalar_lea.vmem %s0, 64
    %v554 = vld [vmem:[%s553] sm:$0xff]
    %v555 = vmul.f32 %v497, 0.85
    %v556 = vmul.f32 %v554, 6.6666665
    %v557 = vadd.f32 %v555, %v556
    %v558 = vmul.f32 %v500, 0.9
    %v559 = vmul.f32 %v497, 10.0
    %v560 = vadd.f32 %v558, %v559
    %v561 = vmul.f32 %v502, 0.65
    %v562 = vsub.f32 %v561, %v526
    %563 = vmatpush.msra.mxu0 %v52
    %564 = vmatpush.msra.mxu0 %v51
    %565 = vmatpush.msra.mxu0 %v50
    %566 = vmatpush.msra.mxu0 %v49
    %567 = vmatpush.msra.mxu0 %v48
    %568 = vmatpush.msra.mxu0 %v47
    %569 = vmatpush.msra.mxu0 %v46
    %570 = vmatpush.msra.mxu0 %v45
    %571 = vmatpush.msra.mxu0 %v44
    %572 = vmatpush.msra.mxu0 %v43
    %573 = vmatpush.msra.mxu0 %v42
    %574 = vmatpush.msra.mxu0 %v41
    %575 = vmatpush.msra.mxu0 %v40
    %576 = vmatpush.msra.mxu0 %v39
    %577 = vmatpush.msra.mxu0 %v38
    %578 = vmatpush.msra.mxu0 %v37
    %579 = vmatmul.f32.gmra.mxu0 %v560
    %v580 = vpop.f32.mrf.mxu0
    %v581 = vadd.f32 %v81, %v580
    %582 = vdwg.mxu0
    %v583 = vadd.f32 %v581, %v562
    %vm584 = vcmp.ge.f32.partialorder %v583, 10.0
    %v585 = vsel %vm584, 1, 0
    %v586 = vcvt.s32.f32 %v585
    %587 = vmatpush.msra.mxu0 %v69
    %588 = vmatpush.msra.mxu0 %v68
    %589 = vmatpush.msra.mxu0 %v67
    %590 = vmatpush.msra.mxu0 %v66
    %591 = vmatpush.msra.mxu0 %v65
    %592 = vmatpush.msra.mxu0 %v64
    %593 = vmatpush.msra.mxu0 %v63
    %594 = vmatpush.msra.mxu0 %v62
    %595 = vmatpush.msra.mxu0 %v61
    %596 = vmatpush.msra.mxu0 %v60
    %597 = vmatpush.msra.mxu0 %v59
    %598 = vmatpush.msra.mxu0 %v58
    %599 = vmatpush.msra.mxu0 %v57
    %600 = vmatpush.msra.mxu0 %v56
    %601 = vmatpush.msra.mxu0 %v55
    %602 = vmatpush.msra.mxu0 %v54
    %603 = vmatmul.f32.gmra.mxu0 %v586
    %v604 = vpop.f32.mrf.mxu0
    %v605 = vadd.f32 %v108, %v604
    %606 = vdwg.mxu0
    %s607 = scalar_lea.vmem [#allocation6], 64
    %608 = vst [vmem:[%s607] sm:$0xff] %v586
    %s609 = scalar_lea.vmem [#allocation8], 64
    %610 = vst [vmem:[%s609] sm:$0xff] %v583
    %s611 = scalar_lea.vmem [#allocation10], 64
    %612 = vst [vmem:[%s611] sm:$0xff] %v605
    %s613 = scalar_lea.vmem %s0, 72
    %v614 = vld [vmem:[%s613] sm:$0xff]
    %v615 = vmul.f32 %v557, 0.85
    %v616 = vmul.f32 %v614, 6.6666665
    %v617 = vadd.f32 %v615, %v616
    %v618 = vmul.f32 %v560, 0.9
    %v619 = vmul.f32 %v557, 10.0
    %v620 = vadd.f32 %v618, %v619
    %v621 = vmul.f32 %v562, 0.65
    %v622 = vsub.f32 %v621, %v586
    %623 = vmatpush.msra.mxu0 %v52
    %624 = vmatpush.msra.mxu0 %v51
    %625 = vmatpush.msra.mxu0 %v50
    %626 = vmatpush.msra.mxu0 %v49
    %627 = vmatpush.msra.mxu0 %v48
    %628 = vmatpush.msra.mxu0 %v47
    %629 = vmatpush.msra.mxu0 %v46
    %630 = vmatpush.msra.mxu0 %v45
    %631 = vmatpush.msra.mxu0 %v44
    %632 = vmatpush.msra.mxu0 %v43
    %633 = vmatpush.msra.mxu0 %v42
    %634 = vmatpush.msra.mxu0 %v41
    %635 = vmatpush.msra.mxu0 %v40
    %636 = vmatpush.msra.mxu0 %v39
    %637 = vmatpush.msra.mxu0 %v38
    %638 = vmatpush.msra.mxu0 %v37
    %639 = vmatmul.f32.gmra.mxu0 %v620
    %v640 = vpop.f32.mrf.mxu0
    %v641 = vadd.f32 %v81, %v640
    %642 = vdwg.mxu0
    %v643 = vadd.f32 %v641, %v622
    %vm644 = vcmp.ge.f32.partialorder %v643, 10.0
    %v645 = vsel %vm644, 1, 0
    %v646 = vcvt.s32.f32 %v645
    %647 = vmatpush.msra.mxu0 %v69
    %648 = vmatpush.msra.mxu0 %v68
    %649 = vmatpush.msra.mxu0 %v67
    %650 = vmatpush.msra.mxu0 %v66
    %651 = vmatpush.msra.mxu0 %v65
    %652 = vmatpush.msra.mxu0 %v64
    %653 = vmatpush.msra.mxu0 %v63
    %654 = vmatpush.msra.mxu0 %v62
    %655 = vmatpush.msra.mxu0 %v61
    %656 = vmatpush.msra.mxu0 %v60
    %657 = vmatpush.msra.mxu0 %v59
    %658 = vmatpush.msra.mxu0 %v58
    %659 = vmatpush.msra.mxu0 %v57
    %660 = vmatpush.msra.mxu0 %v56
    %661 = vmatpush.msra.mxu0 %v55
    %662 = vmatpush.msra.mxu0 %v54
    %663 = vmatmul.f32.gmra.mxu0 %v646
    %v664 = vpop.f32.mrf.mxu0
    %v665 = vadd.f32 %v108, %v664
    %666 = vdwg.mxu0
    %s667 = scalar_lea.vmem [#allocation6], 72
    %668 = vst [vmem:[%s667] sm:$0xff] %v646
    %s669 = scalar_lea.vmem [#allocation8], 72
    %670 = vst [vmem:[%s669] sm:$0xff] %v643
    %s671 = scalar_lea.vmem [#allocation10], 72
    %672 = vst [vmem:[%s671] sm:$0xff] %v665
    %673 = vst [vmem:[#allocation2] sm:$0xff] %v620
    %674 = vst [vmem:[#allocation3] sm:$0xff] %v617
    %675 = vst [vmem:[#allocation4] sm:$0xff] %v622
    %676 = vst [vmem:[#allocation5] sm:$0xff] %v646
    // Predicated region
    $region26: #{decolle_forward_sequence.1} parent=1 // pred_check
      _
    $region27: #{decolle_forward_sequence.1} parent=1 // pred_check_branch
      %678 = sbr.rel (0) target = $region29
    $region28: #{decolle_forward_sequence.1} parent=1 // pred_region
      %680 = vsyncadd [#allocation7], 0
      %s681 = sshll.u32 [#allocation6], 4
      %s682 = int_to_ptr.vmem [resolvable:$true] %s681
      %s683 = sshll.u32 %s5, 4
      %s684 = int_to_ptr.hbm [resolvable:$true] %s683
      %689 = dma.vmem_to_hbm [thread:$0]  %s682, 1280, %s684, [#allocation7], 128, 128, 8
    $region29: #{decolle_forward_sequence.1} parent=1 // pred_fallthru
      _
    // Predicated region
    $region30: #{decolle_forward_sequence.1} parent=1 // pred_check
      _
    $region31: #{decolle_forward_sequence.1} parent=1 // pred_check_branch
      %691 = sbr.rel (0) target = $region33
    $region32: #{decolle_forward_sequence.1} parent=1 // pred_region
      %693 = vsyncadd [#allocation9], 0
      %s694 = sshll.u32 [#allocation8], 4
      %s695 = int_to_ptr.vmem [resolvable:$true] %s694
      %s696 = sshll.u32 %s6, 4
      %s697 = int_to_ptr.hbm [resolvable:$true] %s696
      %702 = dma.vmem_to_hbm [thread:$0]  %s695, 1280, %s697, [#allocation9], 128, 128, 8
    $region33: #{decolle_forward_sequence.1} parent=1 // pred_fallthru
      _
    // Predicated region
    $region34: #{decolle_forward_sequence.1} parent=1 // pred_check
      _
    $region35: #{decolle_forward_sequence.1} parent=1 // pred_check_branch
      %704 = sbr.rel (0) target = $region37
    $region36: #{decolle_forward_sequence.1} parent=1 // pred_region
      %706 = vsyncadd [#allocation9], 0
      %s707 = sshll.u32 [#allocation10], 4
      %s708 = int_to_ptr.vmem [resolvable:$true] %s707
      %s709 = sshll.u32 %s7, 4
      %s710 = int_to_ptr.hbm [resolvable:$true] %s709
      %715 = dma.vmem_to_hbm [thread:$0]  %s708, 1280, %s710, [#allocation9], 128, 128, 8
    $region37: #{decolle_forward_sequence.1} parent=1 // pred_fallthru
      _
    // Predicated region
    $region38: #{decolle_forward_sequence.1} parent=1 // pred_check
      _
    $region39: #{decolle_forward_sequence.1} parent=1 // pred_check_branch
      %717 = sbr.rel (0) target = $region41
    $region40: #{decolle_forward_sequence.1} parent=1 // pred_region
      %719 = dma.done [#allocation7], 1280
    $region41: #{decolle_forward_sequence.1} parent=1 // pred_fallthru
      _
    // Predicated region
    $region42: #{decolle_forward_sequence.1} parent=1 // pred_check
      _
    $region43: #{decolle_forward_sequence.1} parent=1 // pred_check_branch
      %721 = sbr.rel (0) target = $region45
    $region44: #{decolle_forward_sequence.1} parent=1 // pred_region
      %723 = dma.done [#allocation9], 1280
    $region45: #{decolle_forward_sequence.1} parent=1 // pred_fallthru
      _
    // Predicated region
    $region46: #{decolle_forward_sequence.1} parent=1 // pred_check
      _
    $region47: #{decolle_forward_sequence.1} parent=1 // pred_check_branch
      %725 = sbr.rel (0) target = $region49
    $region48: #{decolle_forward_sequence.1} parent=1 // pred_region
      %727 = dma.done [#allocation9], 1280
    $region49: #{decolle_forward_sequence.1} parent=1 // pred_fallthru
      _
    %728 = vsyncpa [#allocation7], 1
    %729 = vsyncpa [#allocation9], 1

</llo_original>
